<compile_context>
chip_gen: v5e
topology: v5e:2x2
jax: 0.10.0
libtpu: 0.0.40
codegen_flags: <defaults>
</compile_context>

<pallas_src>
import jax
import jax.numpy as jnp
from jax.experimental import pallas as pl
from jax.experimental.pallas import tpu as pltpu

N_STAGES = 3
WIDTH_MULTS = [0.5, 0.6, 0.7, 0.8, 0.9, 1.0]
CONSTRAINT_LIST = [10.0, 12.5, 15.0, 17.5, 20.0]
HIDDEN = 64
N_SUPERCLASS = 20
N_WM = len(WIDTH_MULTS)

LANES = 128                 # one vreg lane width; also == 2 * HIDDEN
GATES_OUT = 4 * LANES       # 4 gates, each padded to a 128-lane stride
NEG = -1e30                 # mask value for padded logit lanes


def controller_kernel(tau_ref, xh0_ref, w_fused_ref, b_fused_ref,
                      w_lin_ref, b_lin_ref, wm_emb_ref, gumbel_ref,
                      wbs_ref, probs_ref):
    H = HIDDEN

    # Hoisted scalars / constants (off the per-stage chain).
    inv_tau = 1.0 / tau_ref[0, 0]
    lane = jax.lax.broadcasted_iota(jnp.int32, (1, LANES), 1)
    row_ids = jax.lax.broadcasted_iota(jnp.int32, (8, LANES), 0)
    wm_emb = wm_emb_ref[...]                       # (8, 128): rows 0..5, lanes H:2H

    # Deterministic outputs (rows 3..7 unused; lane-dense full-tile store).
    wbs_ref[...] = jnp.zeros((8, LANES), jnp.float32)
    probs_ref[...] = jnp.zeros((8, LANES), jnp.float32)

    # Persistent LSTM state: xh = [h (lanes 0:H) | embed (lanes H:2H)], c padded.
    xh = xh0_ref[...]                              # (1, 128)
    c = jnp.zeros((1, LANES), jnp.float32)         # pad lanes stay exactly 0

    # Static unroll: each stage depends on the previous one's sampled embedding.
    for stage in range(N_STAGES):
        # Fused LSTM gates: one MXU op. Gate g lives in lanes [g*128, g*128+64),
        # padded lanes are 0 -> sigmoid(0)=0.5 / tanh(0)=0 keep c,h pad lanes at 0.
        gates = (jnp.dot(xh, w_fused_ref[...], preferred_element_type=jnp.float32)
                 + b_fused_ref[...])               # (1, 512)
        i_g = jax.nn.sigmoid(gates[:, 0:LANES])
        f_g = jax.nn.sigmoid(gates[:, LANES:2 * LANES])
        g_g = jnp.tanh(gates[:, 2 * LANES:3 * LANES])
        o_g = jax.nn.sigmoid(gates[:, 3 * LANES:4 * LANES])
        c = f_g * c + i_g * g_g
        h = o_g * jnp.tanh(c)                      # (1, 128), lanes H:2H == 0

        # width_linear (padded: lanes >= N_WM get -1e30 via the bias).
        logits = (jnp.dot(h, w_lin_ref[...], preferred_element_type=jnp.float32)
                  + b_lin_ref[...])                # (1, 128)

        # z = (logits + gumbel) / tau  (single hoisted reciprocal).
        z = (logits + gumbel_ref[stage:stage + 1, :]) * inv_tau

        # ---- critical path: hard one-hot from z, then next-stage embedding ----
        m = jnp.max(z, axis=-1, keepdims=True)                         # (1, 1)
        samp = jnp.min(jnp.where(z >= m, lane, LANES),
                       axis=-1, keepdims=True)                         # (1, 1) int32
        y_hard = (lane == samp).astype(jnp.float32)                    # (1, 128)

        # Embedding "gather" on the VPU/XLU: sublane select + reduce over 6 rows.
        sel = (row_ids == samp).astype(jnp.float32)                    # (8, 128)
        embed = jnp.sum(sel * wm_emb, axis=0, keepdims=True)           # (1, 128)
        xh = h + embed              # next LSTM input: [h | embed] (disjoint lanes)

        # ---- off critical path: soft probabilities (exp / sum / normalize) ----
        e = jnp.exp(z - m)                                             # pad lanes -> 0
        y_soft = e / jnp.sum(e, axis=-1, keepdims=True)                # exact divide

        # Full 128-lane row stores (no masked partial stores).
        wbs_ref[stage:stage + 1, :] = y_hard
        probs_ref[stage:stage + 1, :] = y_soft


def init_params(key, init_range=0.1):
    ks = jax.random.split(key, 9)
    u = lambda k, shape: jax.random.uniform(k, shape, jnp.float32,
                                            -init_range, init_range)
    return dict(
        superclass_emb=u(ks[0], (N_SUPERCLASS, HIDDEN // 2)),
        condition_emb=u(ks[1], (len(CONSTRAINT_LIST), HIDDEN // 2)),
        width_mult_emb=u(ks[2], (N_WM, HIDDEN)),
        lstm_w_ih=u(ks[3], (4 * HIDDEN, HIDDEN)),
        lstm_w_hh=u(ks[4], (4 * HIDDEN, HIDDEN)),
        lstm_b_ih=u(ks[5], (4 * HIDDEN,)),
        lstm_b_hh=u(ks[6], (4 * HIDDEN,)),
        lin_w=u(ks[7], (N_WM, HIDDEN)),
        lin_b=u(ks[8], (N_WM,)),
    )


def prepare_kernel_params(params):
    """One-time layout prep: fuse/transpose/pad weights for the kernel."""
    H = HIDDEN
    # Fused LSTM weight for xh = [h | embed]: rows 0:H -> W_hh^T, rows H:2H -> W_ih^T.
    w_hh_t = params["lstm_w_hh"].T                         # (H, 4H)
    w_ih_t = params["lstm_w_ih"].T                         # (H, 4H)
    w_cat = jnp.concatenate([w_hh_t, w_ih_t], axis=0)      # (2H, 4H)
    b_cat = (params["lstm_b_ih"] + params["lstm_b_hh"])[None, :]   # (1, 4H)

    # Pad each gate's H output columns into a full 128-lane stride.
    w_fused = jnp.zeros((2 * H, GATES_OUT), jnp.float32)
    b_fused = jnp.zeros((1, GATES_OUT), jnp.float32)
    for g in range(4):
        w_fused = w_fused.at[:, g * LANES:g * LANES + H].set(w_cat[:, g * H:(g + 1) * H])
        b_fused = b_fused.at[:, g * LANES:g * LANES + H].set(b_cat[:, g * H:(g + 1) * H])

    # width_linear padded to (128, 128); lanes >= N_WM masked via a -1e30 bias.
    w_lin = jnp.zeros((LANES, LANES), jnp.float32)
    w_lin = w_lin.at[:H, :N_WM].set(params["lin_w"].T)
    b_lin = jnp.full((1, LANES), NEG, jnp.float32)
    b_lin = b_lin.at[:, :N_WM].set(params["lin_b"][None, :])

    # width_mult_embedding shifted into lanes H:2H (the "embed" half of xh),
    # padded to 8 sublanes.
    wm_emb = jnp.zeros((8, LANES), jnp.float32)
    wm_emb = wm_emb.at[:N_WM, H:2 * H].set(params["width_mult_emb"])

    return dict(w_fused=w_fused, b_fused=b_fused,
                w_lin=w_lin, b_lin=b_lin, wm_emb=wm_emb)


def linear_interpolation(condition_emb, constraint):
    # constraint is a Python float (matches the PyTorch control flow).
    for i in range(len(CONSTRAINT_LIST) - 1):
        left, right = CONSTRAINT_LIST[i], CONSTRAINT_LIST[i + 1]
        if left <= constraint <= right:
            w = (right - constraint) / (right - left)
            return w * condition_emb[i] + (1.0 - w) * condition_emb[i + 1]
    raise ValueError("constraint outside constraint_list range")


@jax.jit
def _run(prep, inputs, tau, gumbels):
    H = HIDDEN
    # Initial xh: h = 0 in lanes 0:H, first LSTM input in lanes H:2H.
    xh0 = jnp.zeros((1, 2 * H), jnp.float32).at[:, H:].set(inputs)
    # Gumbel noise padded into an (8, 128) tile.
    gpad = jnp.zeros((8, LANES), jnp.float32).at[:N_STAGES, :N_WM].set(gumbels)
    tau_arr = jnp.reshape(tau, (1, 1)).astype(jnp.float32)

    vmem = pl.BlockSpec(memory_space=pltpu.MemorySpace.VMEM)
    smem = pl.BlockSpec(memory_space=pltpu.MemorySpace.SMEM)

    wbs_p, probs_p = pl.pallas_call(
        controller_kernel,
        out_shape=(
            jax.ShapeDtypeStruct((8, LANES), jnp.float32),  # width_path_wbs (padded)
            jax.ShapeDtypeStruct((8, LANES), jnp.float32),  # width_path_probs (padded)
        ),
        in_specs=[smem, vmem, vmem, vmem, vmem, vmem, vmem, vmem],
        out_specs=(vmem, vmem),
    )(tau_arr, xh0, prep["w_fused"], prep["b_fused"],
      prep["w_lin"], prep["b_lin"], prep["wm_emb"], gpad)

    wbs = wbs_p[:N_STAGES, :N_WM]
    probs = probs_p[:N_STAGES, :N_WM]
    width_mults = jnp.argmax(wbs, axis=-1)
    return width_mults, wbs, probs


def preresnet_controller_forward(prep, params, constraint, superclass_id, tau, noise_key):
    # Build the first LSTM input (glue, plain JAX, matching the PyTorch forward).
    input_constraint = linear_interpolation(params["condition_emb"], constraint)[None, :]
    superclass = params["superclass_emb"][superclass_id]              # (1, H/2)
    inputs = jnp.concatenate([input_constraint, superclass], axis=1)  # (1, H)

    # One gumbel draw per stage (F.gumbel_softmax noise).
    gumbels = jax.random.gumbel(noise_key, (N_STAGES, N_WM), jnp.float32)
    return _run(prep, inputs, jnp.float32(tau), gumbels)


if __name__ == "__main__":
    key = jax.random.PRNGKey(0)
    param_key, noise_key = jax.random.split(key)
    params = init_params(param_key)
    prep = prepare_kernel_params(params)              # one-time layout prep

    constraint = 13.7                                 # lies in [12.5, 15.0]
    superclass_id = jnp.array([3], dtype=jnp.int32)   # shape (1,), like the LongTensor
    tau = 1.0

    width_mults, wbs, probs = preresnet_controller_forward(
        prep, params, constraint, superclass_id, tau, noise_key)
    jax.block_until_ready((width_mults, wbs, probs))

    assert width_mults.shape == (N_STAGES,)
    assert wbs.shape == (N_STAGES, N_WM) and probs.shape == (N_STAGES, N_WM)
    # each hard vector is a valid one-hot, each soft vector sums to 1
    assert bool(jnp.all(jnp.sum(wbs, axis=-1) == 1.0))
    assert bool(jnp.allclose(jnp.sum(probs, axis=-1), 1.0, atol=1e-5))
    print("KERNEL_OK")
</pallas_src>

<mosaic_0001>
module attributes {stable_mosaic.version = 11 : i64} {
  func.func @controller_kernel(%arg0: memref<1x1xf32, #tpu.memory_space<smem>>, %arg1: memref<1x128xf32, #tpu.memory_space<vmem>>, %arg2: memref<128x512xf32, #tpu.memory_space<vmem>>, %arg3: memref<1x512xf32, #tpu.memory_space<vmem>>, %arg4: memref<128x128xf32, #tpu.memory_space<vmem>>, %arg5: memref<1x128xf32, #tpu.memory_space<vmem>>, %arg6: memref<8x128xf32, #tpu.memory_space<vmem>>, %arg7: memref<8x128xf32, #tpu.memory_space<vmem>>, %arg8: memref<8x128xf32, #tpu.memory_space<vmem>>, %arg9: memref<8x128xf32, #tpu.memory_space<vmem>>) attributes {dimension_semantics = [], scalar_prefetch = 0 : i64, scratch_operands = 0 : i64, tpu.core_type = #tpu.core_type<tc>} {
    %c0 = arith.constant 0 : index
    %c0_0 = arith.constant 0 : index
    %0 = memref.load %arg0[%c0, %c0_0] : memref<1x1xf32, #tpu.memory_space<smem>>
    %cst = arith.constant 1.000000e+00 : f32
    %1 = arith.divf %cst, %0 : f32
    %2 = tpu.iota {dimensions = array<i32: 1>} : vector<1x128xi32>
    %3 = tpu.iota {dimensions = array<i32: 0>} : vector<8x128xi32>
    %c0_1 = arith.constant 0 : index
    %c0_2 = arith.constant 0 : index
    %4 = vector.load %arg6[%c0_1, %c0_2] : memref<8x128xf32, #tpu.memory_space<vmem>>, vector<8x128xf32>
    %cst_3 = arith.constant 0.000000e+00 : f32
    %5 = vector.broadcast %cst_3 : f32 to vector<8x128xf32>
    %c0_4 = arith.constant 0 : index
    %c0_5 = arith.constant 0 : index
    %6 = vector.load %arg8[%c0_4, %c0_5] : memref<8x128xf32, #tpu.memory_space<vmem>>, vector<8x128xf32>
    tpu.vector_store %arg8[%c0_4, %c0_5], %5 {strides = array<i32>} : memref<8x128xf32, #tpu.memory_space<vmem>>, vector<8x128xf32>,
    %cst_6 = arith.constant 0.000000e+00 : f32
    %7 = vector.broadcast %cst_6 : f32 to vector<8x128xf32>
    %c0_7 = arith.constant 0 : index
    %c0_8 = arith.constant 0 : index
    %8 = vector.load %arg9[%c0_7, %c0_8] : memref<8x128xf32, #tpu.memory_space<vmem>>, vector<8x128xf32>
    tpu.vector_store %arg9[%c0_7, %c0_8], %7 {strides = array<i32>} : memref<8x128xf32, #tpu.memory_space<vmem>>, vector<8x128xf32>,
    %c0_9 = arith.constant 0 : index
    %c0_10 = arith.constant 0 : index
    %9 = vector.load %arg1[%c0_9, %c0_10] : memref<1x128xf32, #tpu.memory_space<vmem>>, vector<1x128xf32>
    %cst_11 = arith.constant 0.000000e+00 : f32
    %10 = vector.broadcast %cst_11 : f32 to vector<1x128xf32>
    %c0_12 = arith.constant 0 : index
    %c0_13 = arith.constant 0 : index
    %11 = vector.load %arg2[%c0_12, %c0_13] : memref<128x512xf32, #tpu.memory_space<vmem>>, vector<128x512xf32>
    %cst_14 = arith.constant dense<0.000000e+00> : vector<1x512xf32>
    %12 = tpu.matmul %9, %11, %cst_14 {dimension_numbers = #tpu.dot_dimension_numbers<[1], [0], [0], [1], [0, 0, 1, 1], [], []>} : vector<1x128xf32>, vector<128x512xf32>, vector<1x512xf32> -> vector<1x512xf32>
    %c0_15 = arith.constant 0 : index
    %c0_16 = arith.constant 0 : index
    %13 = vector.load %arg3[%c0_15, %c0_16] : memref<1x512xf32, #tpu.memory_space<vmem>>, vector<1x512xf32>
    %14 = arith.addf %12, %13 : vector<1x512xf32>
    %15 = vector.extract_strided_slice %14 {offsets = [0, 0], sizes = [1, 128], strides = [1, 1]} : vector<1x512xf32> to vector<1x128xf32>
    %16 = arith.negf %15 : vector<1x128xf32>
    %17 = math.exp %16 : vector<1x128xf32>
    %cst_17 = arith.constant 1.000000e+00 : f32
    %18 = vector.broadcast %cst_17 : f32 to vector<1x128xf32>
    %19 = arith.addf %18, %17 : vector<1x128xf32>
    %20 = arith.divf %18, %19 : vector<1x128xf32>
    %21 = vector.extract_strided_slice %14 {offsets = [0, 128], sizes = [1, 128], strides = [1, 1]} : vector<1x512xf32> to vector<1x128xf32>
    %22 = arith.negf %21 : vector<1x128xf32>
    %23 = math.exp %22 : vector<1x128xf32>
    %cst_18 = arith.constant 1.000000e+00 : f32
    %24 = vector.broadcast %cst_18 : f32 to vector<1x128xf32>
    %25 = arith.addf %24, %23 : vector<1x128xf32>
    %26 = arith.divf %24, %25 : vector<1x128xf32>
    %27 = vector.extract_strided_slice %14 {offsets = [0, 256], sizes = [1, 128], strides = [1, 1]} : vector<1x512xf32> to vector<1x128xf32>
    %28 = math.tanh %27 : vector<1x128xf32>
    %29 = vector.extract_strided_slice %14 {offsets = [0, 384], sizes = [1, 128], strides = [1, 1]} : vector<1x512xf32> to vector<1x128xf32>
    %30 = arith.negf %29 : vector<1x128xf32>
    %31 = math.exp %30 : vector<1x128xf32>
    %cst_19 = arith.constant 1.000000e+00 : f32
    %32 = vector.broadcast %cst_19 : f32 to vector<1x128xf32>
    %33 = arith.addf %32, %31 : vector<1x128xf32>
    %34 = arith.divf %32, %33 : vector<1x128xf32>
    %35 = arith.mulf %26, %10 : vector<1x128xf32>
    %36 = arith.mulf %20, %28 : vector<1x128xf32>
    %37 = arith.addf %35, %36 : vector<1x128xf32>
    %38 = math.tanh %37 : vector<1x128xf32>
    %39 = arith.mulf %34, %38 : vector<1x128xf32>
    %c0_20 = arith.constant 0 : index
    %c0_21 = arith.constant 0 : index
    %40 = vector.load %arg4[%c0_20, %c0_21] : memref<128x128xf32, #tpu.memory_space<vmem>>, vector<128x128xf32>
    %cst_22 = arith.constant dense<0.000000e+00> : vector<1x128xf32>
    %41 = tpu.matmul %39, %40, %cst_22 {dimension_numbers = #tpu.dot_dimension_numbers<[1], [0], [0], [1], [0, 0, 1, 1], [], []>} : vector<1x128xf32>, vector<128x128xf32>, vector<1x128xf32> -> vector<1x128xf32>
    %c0_23 = arith.constant 0 : index
    %c0_24 = arith.constant 0 : index
    %42 = vector.load %arg5[%c0_23, %c0_24] : memref<1x128xf32, #tpu.memory_space<vmem>>, vector<1x128xf32>
    %43 = arith.addf %41, %42 : vector<1x128xf32>
    %c0_25 = arith.constant 0 : index
    %c0_26 = arith.constant 0 : index
    %44 = vector.load %arg7[%c0_25, %c0_26] : memref<8x128xf32, #tpu.memory_space<vmem>>, vector<1x128xf32>
    %45 = arith.addf %43, %44 : vector<1x128xf32>
    %46 = vector.broadcast %1 : f32 to vector<1x128xf32>
    %47 = arith.mulf %45, %46 : vector<1x128xf32>
    %cst_27 = arith.constant dense<0xFF800000> : vector<1xf32>
    %48 = vector.multi_reduction <maximumf>, %47, %cst_27 [1] : vector<1x128xf32> to vector<1xf32>
    %49 = vector.shape_cast %48 : vector<1xf32> to vector<1x1xf32>
    %50 = vector.broadcast %49 : vector<1x1xf32> to vector<1x128xf32>
    %51 = arith.cmpf oge, %47, %50 : vector<1x128xf32>
    %c128_i32 = arith.constant 128 : i32
    %52 = vector.broadcast %c128_i32 : i32 to vector<1x128xi32>
    %53 = arith.select %51, %2, %52 : vector<1x128xi1>, vector<1x128xi32>
    %cst_28 = arith.constant dense<2147483647> : vector<1xi32>
    %54 = vector.multi_reduction <minsi>, %53, %cst_28 [1] : vector<1x128xi32> to vector<1xi32>
    %55 = vector.shape_cast %54 : vector<1xi32> to vector<1x1xi32>
    %56 = vector.broadcast %55 : vector<1x1xi32> to vector<1x128xi32>
    %57 = arith.cmpi eq, %2, %56 : vector<1x128xi32>
    %58 = arith.extui %57 : vector<1x128xi1> to vector<1x128xi32>
    %59 = arith.sitofp %58 : vector<1x128xi32> to vector<1x128xf32>
    %60 = vector.broadcast %55 : vector<1x1xi32> to vector<8x128xi32>
    %61 = arith.cmpi eq, %3, %60 : vector<8x128xi32>
    %62 = arith.extui %61 : vector<8x128xi1> to vector<8x128xi32>
    %63 = arith.sitofp %62 : vector<8x128xi32> to vector<8x128xf32>
    %64 = arith.mulf %63, %4 : vector<8x128xf32>
    %cst_29 = arith.constant dense<0.000000e+00> : vector<128xf32>
    %65 = vector.multi_reduction <add>, %64, %cst_29 [0] : vector<8x128xf32> to vector<128xf32>
    %66 = vector.shape_cast %65 : vector<128xf32> to vector<1x128xf32>
    %67 = arith.addf %39, %66 : vector<1x128xf32>
    %68 = vector.broadcast %49 : vector<1x1xf32> to vector<1x128xf32>
    %69 = arith.subf %47, %68 : vector<1x128xf32>
    %70 = math.exp %69 : vector<1x128xf32>
    %cst_30 = arith.constant dense<0.000000e+00> : vector<1xf32>
    %71 = vector.multi_reduction <add>, %70, %cst_30 [1] : vector<1x128xf32> to vector<1xf32>
    %72 = vector.shape_cast %71 : vector<1xf32> to vector<1x1xf32>
    %73 = vector.broadcast %72 : vector<1x1xf32> to vector<1x128xf32>
    %74 = arith.divf %70, %73 : vector<1x128xf32>
    %c0_31 = arith.constant 0 : index
    %c0_32 = arith.constant 0 : index
    %75 = vector.load %arg8[%c0_31, %c0_32] : memref<8x128xf32, #tpu.memory_space<vmem>>, vector<1x128xf32>
    tpu.vector_store %arg8[%c0_31, %c0_32], %59 {strides = array<i32>} : memref<8x128xf32, #tpu.memory_space<vmem>>, vector<1x128xf32>,
    %c0_33 = arith.constant 0 : index
    %c0_34 = arith.constant 0 : index
    %76 = vector.load %arg9[%c0_33, %c0_34] : memref<8x128xf32, #tpu.memory_space<vmem>>, vector<1x128xf32>
    tpu.vector_store %arg9[%c0_33, %c0_34], %74 {strides = array<i32>} : memref<8x128xf32, #tpu.memory_space<vmem>>, vector<1x128xf32>,
    %c0_35 = arith.constant 0 : index
    %c0_36 = arith.constant 0 : index
    %77 = vector.load %arg2[%c0_35, %c0_36] : memref<128x512xf32, #tpu.memory_space<vmem>>, vector<128x512xf32>
    %cst_37 = arith.constant dense<0.000000e+00> : vector<1x512xf32>
    %78 = tpu.matmul %67, %77, %cst_37 {dimension_numbers = #tpu.dot_dimension_numbers<[1], [0], [0], [1], [0, 0, 1, 1], [], []>} : vector<1x128xf32>, vector<128x512xf32>, vector<1x512xf32> -> vector<1x512xf32>
    %c0_38 = arith.constant 0 : index
    %c0_39 = arith.constant 0 : index
    %79 = vector.load %arg3[%c0_38, %c0_39] : memref<1x512xf32, #tpu.memory_space<vmem>>, vector<1x512xf32>
    %80 = arith.addf %78, %79 : vector<1x512xf32>
    %81 = vector.extract_strided_slice %80 {offsets = [0, 0], sizes = [1, 128], strides = [1, 1]} : vector<1x512xf32> to vector<1x128xf32>
    %82 = arith.negf %81 : vector<1x128xf32>
    %83 = math.exp %82 : vector<1x128xf32>
    %cst_40 = arith.constant 1.000000e+00 : f32
    %84 = vector.broadcast %cst_40 : f32 to vector<1x128xf32>
    %85 = arith.addf %84, %83 : vector<1x128xf32>
    %86 = arith.divf %84, %85 : vector<1x128xf32>
    %87 = vector.extract_strided_slice %80 {offsets = [0, 128], sizes = [1, 128], strides = [1, 1]} : vector<1x512xf32> to vector<1x128xf32>
    %88 = arith.negf %87 : vector<1x128xf32>
    %89 = math.exp %88 : vector<1x128xf32>
    %cst_41 = arith.constant 1.000000e+00 : f32
    %90 = vector.broadcast %cst_41 : f32 to vector<1x128xf32>
    %91 = arith.addf %90, %89 : vector<1x128xf32>
    %92 = arith.divf %90, %91 : vector<1x128xf32>
    %93 = vector.extract_strided_slice %80 {offsets = [0, 256], sizes = [1, 128], strides = [1, 1]} : vector<1x512xf32> to vector<1x128xf32>
    %94 = math.tanh %93 : vector<1x128xf32>
    %95 = vector.extract_strided_slice %80 {offsets = [0, 384], sizes = [1, 128], strides = [1, 1]} : vector<1x512xf32> to vector<1x128xf32>
    %96 = arith.negf %95 : vector<1x128xf32>
    %97 = math.exp %96 : vector<1x128xf32>
    %cst_42 = arith.constant 1.000000e+00 : f32
    %98 = vector.broadcast %cst_42 : f32 to vector<1x128xf32>
    %99 = arith.addf %98, %97 : vector<1x128xf32>
    %100 = arith.divf %98, %99 : vector<1x128xf32>
    %101 = arith.mulf %92, %37 : vector<1x128xf32>
    %102 = arith.mulf %86, %94 : vector<1x128xf32>
    %103 = arith.addf %101, %102 : vector<1x128xf32>
    %104 = math.tanh %103 : vector<1x128xf32>
    %105 = arith.mulf %100, %104 : vector<1x128xf32>
    %c0_43 = arith.constant 0 : index
    %c0_44 = arith.constant 0 : index
    %106 = vector.load %arg4[%c0_43, %c0_44] : memref<128x128xf32, #tpu.memory_space<vmem>>, vector<128x128xf32>
    %cst_45 = arith.constant dense<0.000000e+00> : vector<1x128xf32>
    %107 = tpu.matmul %105, %106, %cst_45 {dimension_numbers = #tpu.dot_dimension_numbers<[1], [0], [0], [1], [0, 0, 1, 1], [], []>} : vector<1x128xf32>, vector<128x128xf32>, vector<1x128xf32> -> vector<1x128xf32>
    %c0_46 = arith.constant 0 : index
    %c0_47 = arith.constant 0 : index
    %108 = vector.load %arg5[%c0_46, %c0_47] : memref<1x128xf32, #tpu.memory_space<vmem>>, vector<1x128xf32>
    %109 = arith.addf %107, %108 : vector<1x128xf32>
    %c1 = arith.constant 1 : index
    %c0_48 = arith.constant 0 : index
    %110 = vector.load %arg7[%c1, %c0_48] : memref<8x128xf32, #tpu.memory_space<vmem>>, vector<1x128xf32>
    %111 = arith.addf %109, %110 : vector<1x128xf32>
    %112 = vector.broadcast %1 : f32 to vector<1x128xf32>
    %113 = arith.mulf %111, %112 : vector<1x128xf32>
    %cst_49 = arith.constant dense<0xFF800000> : vector<1xf32>
    %114 = vector.multi_reduction <maximumf>, %113, %cst_49 [1] : vector<1x128xf32> to vector<1xf32>
    %115 = vector.shape_cast %114 : vector<1xf32> to vector<1x1xf32>
    %116 = vector.broadcast %115 : vector<1x1xf32> to vector<1x128xf32>
    %117 = arith.cmpf oge, %113, %116 : vector<1x128xf32>
    %c128_i32_50 = arith.constant 128 : i32
    %118 = vector.broadcast %c128_i32_50 : i32 to vector<1x128xi32>
    %119 = arith.select %117, %2, %118 : vector<1x128xi1>, vector<1x128xi32>
    %cst_51 = arith.constant dense<2147483647> : vector<1xi32>
    %120 = vector.multi_reduction <minsi>, %119, %cst_51 [1] : vector<1x128xi32> to vector<1xi32>
    %121 = vector.shape_cast %120 : vector<1xi32> to vector<1x1xi32>
    %122 = vector.broadcast %121 : vector<1x1xi32> to vector<1x128xi32>
    %123 = arith.cmpi eq, %2, %122 : vector<1x128xi32>
    %124 = arith.extui %123 : vector<1x128xi1> to vector<1x128xi32>
    %125 = arith.sitofp %124 : vector<1x128xi32> to vector<1x128xf32>
    %126 = vector.broadcast %121 : vector<1x1xi32> to vector<8x128xi32>
    %127 = arith.cmpi eq, %3, %126 : vector<8x128xi32>
    %128 = arith.extui %127 : vector<8x128xi1> to vector<8x128xi32>
    %129 = arith.sitofp %128 : vector<8x128xi32> to vector<8x128xf32>
    %130 = arith.mulf %129, %4 : vector<8x128xf32>
    %cst_52 = arith.constant dense<0.000000e+00> : vector<128xf32>
    %131 = vector.multi_reduction <add>, %130, %cst_52 [0] : vector<8x128xf32> to vector<128xf32>
    %132 = vector.shape_cast %131 : vector<128xf32> to vector<1x128xf32>
    %133 = arith.addf %105, %132 : vector<1x128xf32>
    %134 = vector.broadcast %115 : vector<1x1xf32> to vector<1x128xf32>
    %135 = arith.subf %113, %134 : vector<1x128xf32>
    %136 = math.exp %135 : vector<1x128xf32>
    %cst_53 = arith.constant dense<0.000000e+00> : vector<1xf32>
    %137 = vector.multi_reduction <add>, %136, %cst_53 [1] : vector<1x128xf32> to vector<1xf32>
    %138 = vector.shape_cast %137 : vector<1xf32> to vector<1x1xf32>
    %139 = vector.broadcast %138 : vector<1x1xf32> to vector<1x128xf32>
    %140 = arith.divf %136, %139 : vector<1x128xf32>
    %c1_54 = arith.constant 1 : index
    %c0_55 = arith.constant 0 : index
    %141 = vector.load %arg8[%c1_54, %c0_55] : memref<8x128xf32, #tpu.memory_space<vmem>>, vector<1x128xf32>
    tpu.vector_store %arg8[%c1_54, %c0_55], %125 {strides = array<i32>} : memref<8x128xf32, #tpu.memory_space<vmem>>, vector<1x128xf32>,
    %c1_56 = arith.constant 1 : index
    %c0_57 = arith.constant 0 : index
    %142 = vector.load %arg9[%c1_56, %c0_57] : memref<8x128xf32, #tpu.memory_space<vmem>>, vector<1x128xf32>
    tpu.vector_store %arg9[%c1_56, %c0_57], %140 {strides = array<i32>} : memref<8x128xf32, #tpu.memory_space<vmem>>, vector<1x128xf32>,
    %c0_58 = arith.constant 0 : index
    %c0_59 = arith.constant 0 : index
    %143 = vector.load %arg2[%c0_58, %c0_59] : memref<128x512xf32, #tpu.memory_space<vmem>>, vector<128x512xf32>
    %cst_60 = arith.constant dense<0.000000e+00> : vector<1x512xf32>
    %144 = tpu.matmul %133, %143, %cst_60 {dimension_numbers = #tpu.dot_dimension_numbers<[1], [0], [0], [1], [0, 0, 1, 1], [], []>} : vector<1x128xf32>, vector<128x512xf32>, vector<1x512xf32> -> vector<1x512xf32>
    %c0_61 = arith.constant 0 : index
    %c0_62 = arith.constant 0 : index
    %145 = vector.load %arg3[%c0_61, %c0_62] : memref<1x512xf32, #tpu.memory_space<vmem>>, vector<1x512xf32>
    %146 = arith.addf %144, %145 : vector<1x512xf32>
    %147 = vector.extract_strided_slice %146 {offsets = [0, 0], sizes = [1, 128], strides = [1, 1]} : vector<1x512xf32> to vector<1x128xf32>
    %148 = arith.negf %147 : vector<1x128xf32>
    %149 = math.exp %148 : vector<1x128xf32>
    %cst_63 = arith.constant 1.000000e+00 : f32
    %150 = vector.broadcast %cst_63 : f32 to vector<1x128xf32>
    %151 = arith.addf %150, %149 : vector<1x128xf32>
    %152 = arith.divf %150, %151 : vector<1x128xf32>
    %153 = vector.extract_strided_slice %146 {offsets = [0, 128], sizes = [1, 128], strides = [1, 1]} : vector<1x512xf32> to vector<1x128xf32>
    %154 = arith.negf %153 : vector<1x128xf32>
    %155 = math.exp %154 : vector<1x128xf32>
    %cst_64 = arith.constant 1.000000e+00 : f32
    %156 = vector.broadcast %cst_64 : f32 to vector<1x128xf32>
    %157 = arith.addf %156, %155 : vector<1x128xf32>
    %158 = arith.divf %156, %157 : vector<1x128xf32>
    %159 = vector.extract_strided_slice %146 {offsets = [0, 256], sizes = [1, 128], strides = [1, 1]} : vector<1x512xf32> to vector<1x128xf32>
    %160 = math.tanh %159 : vector<1x128xf32>
    %161 = vector.extract_strided_slice %146 {offsets = [0, 384], sizes = [1, 128], strides = [1, 1]} : vector<1x512xf32> to vector<1x128xf32>
    %162 = arith.negf %161 : vector<1x128xf32>
    %163 = math.exp %162 : vector<1x128xf32>
    %cst_65 = arith.constant 1.000000e+00 : f32
    %164 = vector.broadcast %cst_65 : f32 to vector<1x128xf32>
    %165 = arith.addf %164, %163 : vector<1x128xf32>
    %166 = arith.divf %164, %165 : vector<1x128xf32>
    %167 = arith.mulf %158, %103 : vector<1x128xf32>
    %168 = arith.mulf %152, %160 : vector<1x128xf32>
    %169 = arith.addf %167, %168 : vector<1x128xf32>
    %170 = math.tanh %169 : vector<1x128xf32>
    %171 = arith.mulf %166, %170 : vector<1x128xf32>
    %c0_66 = arith.constant 0 : index
    %c0_67 = arith.constant 0 : index
    %172 = vector.load %arg4[%c0_66, %c0_67] : memref<128x128xf32, #tpu.memory_space<vmem>>, vector<128x128xf32>
    %cst_68 = arith.constant dense<0.000000e+00> : vector<1x128xf32>
    %173 = tpu.matmul %171, %172, %cst_68 {dimension_numbers = #tpu.dot_dimension_numbers<[1], [0], [0], [1], [0, 0, 1, 1], [], []>} : vector<1x128xf32>, vector<128x128xf32>, vector<1x128xf32> -> vector<1x128xf32>
    %c0_69 = arith.constant 0 : index
    %c0_70 = arith.constant 0 : index
    %174 = vector.load %arg5[%c0_69, %c0_70] : memref<1x128xf32, #tpu.memory_space<vmem>>, vector<1x128xf32>
    %175 = arith.addf %173, %174 : vector<1x128xf32>
    %c2 = arith.constant 2 : index
    %c0_71 = arith.constant 0 : index
    %176 = vector.load %arg7[%c2, %c0_71] : memref<8x128xf32, #tpu.memory_space<vmem>>, vector<1x128xf32>
    %177 = arith.addf %175, %176 : vector<1x128xf32>
    %178 = vector.broadcast %1 : f32 to vector<1x128xf32>
    %179 = arith.mulf %177, %178 : vector<1x128xf32>
    %cst_72 = arith.constant dense<0xFF800000> : vector<1xf32>
    %180 = vector.multi_reduction <maximumf>, %179, %cst_72 [1] : vector<1x128xf32> to vector<1xf32>
    %181 = vector.shape_cast %180 : vector<1xf32> to vector<1x1xf32>
    %182 = vector.broadcast %181 : vector<1x1xf32> to vector<1x128xf32>
    %183 = arith.cmpf oge, %179, %182 : vector<1x128xf32>
    %c128_i32_73 = arith.constant 128 : i32
    %184 = vector.broadcast %c128_i32_73 : i32 to vector<1x128xi32>
    %185 = arith.select %183, %2, %184 : vector<1x128xi1>, vector<1x128xi32>
    %cst_74 = arith.constant dense<2147483647> : vector<1xi32>
    %186 = vector.multi_reduction <minsi>, %185, %cst_74 [1] : vector<1x128xi32> to vector<1xi32>
    %187 = vector.shape_cast %186 : vector<1xi32> to vector<1x1xi32>
    %188 = vector.broadcast %187 : vector<1x1xi32> to vector<1x128xi32>
    %189 = arith.cmpi eq, %2, %188 : vector<1x128xi32>
    %190 = arith.extui %189 : vector<1x128xi1> to vector<1x128xi32>
    %191 = arith.sitofp %190 : vector<1x128xi32> to vector<1x128xf32>
    %192 = vector.broadcast %181 : vector<1x1xf32> to vector<1x128xf32>
    %193 = arith.subf %179, %192 : vector<1x128xf32>
    %194 = math.exp %193 : vector<1x128xf32>
    %cst_75 = arith.constant dense<0.000000e+00> : vector<1xf32>
    %195 = vector.multi_reduction <add>, %194, %cst_75 [1] : vector<1x128xf32> to vector<1xf32>
    %196 = vector.shape_cast %195 : vector<1xf32> to vector<1x1xf32>
    %197 = vector.broadcast %196 : vector<1x1xf32> to vector<1x128xf32>
    %198 = arith.divf %194, %197 : vector<1x128xf32>
    %c2_76 = arith.constant 2 : index
    %c0_77 = arith.constant 0 : index
    %199 = vector.load %arg8[%c2_76, %c0_77] : memref<8x128xf32, #tpu.memory_space<vmem>>, vector<1x128xf32>
    tpu.vector_store %arg8[%c2_76, %c0_77], %191 {strides = array<i32>} : memref<8x128xf32, #tpu.memory_space<vmem>>, vector<1x128xf32>,
    %c2_78 = arith.constant 2 : index
    %c0_79 = arith.constant 0 : index
    %200 = vector.load %arg9[%c2_78, %c0_79] : memref<8x128xf32, #tpu.memory_space<vmem>>, vector<1x128xf32>
    tpu.vector_store %arg9[%c2_78, %c0_79], %198 {strides = array<i32>} : memref<8x128xf32, #tpu.memory_space<vmem>>, vector<1x128xf32>,
    return
  }
}

</mosaic_0001>

<llo_original>
// kernel: _run.1
$region0: #{_run.1}
  #allocation0 [shape = 'u32[]', space=smem, size = 0x4, offset = 0x4, fixed_abs, tag = 'smem constant byte address 0x4 - core index']
  #allocation1 [shape = 'u32[72,128]{1,0:T(1,128)}', space=vmem, size = 0x9000, scoped, tag = 'internal scratch']
  #allocation2 [shape = 'f32[1,1]{1,0:T(1,128)S(6)}', space=smem, size = 0x200, scoped, tag = 'scoped memory for _run.1']
  %s0 = inlined_call_operand.<no memory space> [shape: f32[1,1], index: 0, kind: input, shape index: {}]
  %s1 = inlined_call_operand.vmem [shape: f32[1,128], index: 1, kind: input, shape index: {}]
  %s2 = inlined_call_operand.hbm [shape: f32[128,512], index: 2, kind: input, shape index: {}]
  %s3 = inlined_call_operand.vmem [shape: f32[1,512], index: 3, kind: input, shape index: {}]
  %s4 = inlined_call_operand.hbm [shape: f32[128,128], index: 4, kind: input, shape index: {}]
  %s5 = inlined_call_operand.vmem [shape: f32[1,128], index: 5, kind: input, shape index: {}]
  %s6 = inlined_call_operand.vmem [shape: f32[8,128], index: 6, kind: input, shape index: {}]
  %s7 = inlined_call_operand.vmem [shape: f32[8,128], index: 7, kind: input, shape index: {}]
  %s8 = inlined_call_operand.vmem [shape: f32[8,128], index: 8, kind: output, shape index: {0}]
  %s9 = inlined_call_operand.vmem [shape: f32[8,128], index: 9, kind: output, shape index: {1}]
  %10 = xla_tuple %s8, %s9
  %s11 = sld [smem:[#allocation0]]
  $region58: #{_run.1} parent=0
    _
  %s13 = ssub.s32 1, %s11
  %s14 = scalar_select 0, %s13, %s11
  %15 = sst [smem:[#allocation2]] %s0
  $region1: #{_run.1} parent=0
    #allocation3 [shape = 'u8[262144]{0}', space=vmem, size = 0x40000, scoped, tag = 'input window, operand 2, single buffered']
    #allocation4 [shape = 's32[1]{0}', space=sflag, size = 0x4, scoped, tag = 'scoped memory for _run.1']
    #allocation5 [shape = 'u8[65536]{0}', space=vmem, size = 0x10000, scoped, tag = 'input window, operand 4, single buffered']
    #allocation6 [shape = 's32[1]{0}', space=sflag, size = 0x4, scoped, tag = 'scoped memory for _run.1']
    %16 = vsyncpa [#allocation4], 0
    %17 = vsyncpa [#allocation6], 0
    // Predicated region
    $region2: #{_run.1} parent=1 // pred_check
      _
    $region3: #{_run.1} parent=1 // pred_check_branch
      %19 = sbr.rel (0) target = $region5
    $region4: #{_run.1} parent=1 // pred_region
      _
    $region5: #{_run.1} parent=1 // pred_fallthru
      _
    // Predicated region
    $region6: #{_run.1} parent=1 // pred_check
      _
    $region7: #{_run.1} parent=1 // pred_check_branch
      %21 = sbr.rel (0) target = $region9
    $region8: #{_run.1} parent=1 // pred_region
      _
    $region9: #{_run.1} parent=1 // pred_fallthru
      _
    // Predicated region
    $region10: #{_run.1} parent=1 // pred_check
      _
    $region11: #{_run.1} parent=1 // pred_check_branch
      %23 = sbr.rel (0) target = $region13
    $region12: #{_run.1} parent=1 // pred_region
      %25 = vsyncadd [#allocation4], 0
      %s26 = sshll.u32 %s2, 4
      %s27 = int_to_ptr.hbm [resolvable:$true] %s26
      %s28 = sshll.u32 [#allocation3], 4
      %s29 = int_to_ptr.vmem [resolvable:$true] %s28
      %34 = dma.hbm_to_vmem [thread:$0]  %s27, 8192, %s29, [#allocation4], 512, 512, 32
    $region13: #{_run.1} parent=1 // pred_fallthru
      _
    // Predicated region
    $region14: #{_run.1} parent=1 // pred_check
      _
    $region15: #{_run.1} parent=1 // pred_check_branch
      %36 = sbr.rel (0) target = $region17
    $region16: #{_run.1} parent=1 // pred_region
      _
    $region17: #{_run.1} parent=1 // pred_fallthru
      _
    // Predicated region
    $region18: #{_run.1} parent=1 // pred_check
      _
    $region19: #{_run.1} parent=1 // pred_check_branch
      %38 = sbr.rel (0) target = $region21
    $region20: #{_run.1} parent=1 // pred_region
      %40 = vsyncadd [#allocation6], 0
      %s41 = sshll.u32 %s4, 4
      %s42 = int_to_ptr.hbm [resolvable:$true] %s41
      %s43 = sshll.u32 [#allocation5], 4
      %s44 = int_to_ptr.vmem [resolvable:$true] %s43
      %49 = dma.hbm_to_vmem [thread:$0]  %s42, 2048, %s44, [#allocation6], 128, 128, 8
    $region21: #{_run.1} parent=1 // pred_fallthru
      _
    // Predicated region
    $region22: #{_run.1} parent=1 // pred_check
      _
    $region23: #{_run.1} parent=1 // pred_check_branch
      %51 = sbr.rel (0) target = $region25
    $region24: #{_run.1} parent=1 // pred_region
      _
    $region25: #{_run.1} parent=1 // pred_fallthru
      _
    // Predicated region
    $region26: #{_run.1} parent=1 // pred_check
      _
    $region27: #{_run.1} parent=1 // pred_check_branch
      %53 = sbr.rel (0) target = $region29
    $region28: #{_run.1} parent=1 // pred_region
      _
    $region29: #{_run.1} parent=1 // pred_fallthru
      _
    // Predicated region
    $region30: #{_run.1} parent=1 // pred_check
      _
    $region31: #{_run.1} parent=1 // pred_check_branch
      %55 = sbr.rel (0) target = $region33
    $region32: #{_run.1} parent=1 // pred_region
      _
    $region33: #{_run.1} parent=1 // pred_fallthru
      _
    // Predicated region
    $region34: #{_run.1} parent=1 // pred_check
      _
    $region35: #{_run.1} parent=1 // pred_check_branch
      %57 = sbr.rel (0) target = $region37
    $region36: #{_run.1} parent=1 // pred_region
      %59 = dma.done [#allocation4], 8192
    $region37: #{_run.1} parent=1 // pred_fallthru
      _
    // Predicated region
    $region38: #{_run.1} parent=1 // pred_check
      _
    $region39: #{_run.1} parent=1 // pred_check_branch
      %61 = sbr.rel (0) target = $region41
    $region40: #{_run.1} parent=1 // pred_region
      %63 = dma.done [#allocation6], 2048
    $region41: #{_run.1} parent=1 // pred_fallthru
      _
    %s64 = sld [smem:[#allocation2]]
    %v65 = vstv %s64
    %v66 = vrcp.pop %v65
    %v67 = vmul.f32 %v65, %v66
    %v68 = vsub.f32 1.0, %v67
    %v69 = vmul.f32 %v66, %v68
    %v70 = vadd.f32 %v66, %v69
    %vm71 = vweird.f32 %v65
    %vm72 = vweird.f32 %v66
    %vm73 = vmor %vm71, %vm72
    %v74 = vsel %vm73, %v66, %v70
    %v75 = vand.u32 2147483647, %v65
    %vm76 = vcmp.eq.f32.partialorder %v75, 8.507059e+37
    %v77 = vand.u32 %v65, 2147483648
    %v78 = vor.u32 1.1754944e-38, %v77
    %v79 = vsel %vm76, %v78, %v74
    %s80 = vtos %v79
    %v81 = vlaneseq
    %v82 = vand.u32 %v81, 127
    %v83 = vlaneseq
    %v84 = vshrl.u32 %v83, 7
    %v85 = vld [vmem:[%s6] sm:$0xff]
    %86 = vst [vmem:[%s8] sm:$0xff] 0.0
    %87 = vst [vmem:[%s9] sm:$0xff] 0.0
    %v88 = vld [vmem:[%s1] sm:$0x1]
    %v89 = vld [vmem:[#allocation3] sm:$0xff]
    %v90 = vld [vmem:[#allocation3 + $0x8] sm:$0xff]
    %v91 = vld [vmem:[#allocation3 + $0x10] sm:$0xff]
    %v92 = vld [vmem:[#allocation3 + $0x18] sm:$0xff]
    %v93 = vld [vmem:[#allocation3 + $0x20] sm:$0xff]
    %v94 = vld [vmem:[#allocation3 + $0x28] sm:$0xff]
    %v95 = vld [vmem:[#allocation3 + $0x30] sm:$0xff]
    %v96 = vld [vmem:[#allocation3 + $0x38] sm:$0xff]
    %v97 = vld [vmem:[#allocation3 + $0x40] sm:$0xff]
    %v98 = vld [vmem:[#allocation3 + $0x48] sm:$0xff]
    %v99 = vld [vmem:[#allocation3 + $0x50] sm:$0xff]
    %v100 = vld [vmem:[#allocation3 + $0x58] sm:$0xff]
    %v101 = vld [vmem:[#allocation3 + $0x60] sm:$0xff]
    %v102 = vld [vmem:[#allocation3 + $0x68] sm:$0xff]
    %v103 = vld [vmem:[#allocation3 + $0x70] sm:$0xff]
    %v104 = vld [vmem:[#allocation3 + $0x78] sm:$0xff]
    %v105 = vld [vmem:[#allocation3 + $0x80] sm:$0xff]
    %v106 = vld [vmem:[#allocation3 + $0x88] sm:$0xff]
    %v107 = vld [vmem:[#allocation3 + $0x90] sm:$0xff]
    %v108 = vld [vmem:[#allocation3 + $0x98] sm:$0xff]
    %v109 = vld [vmem:[#allocation3 + $0xa0] sm:$0xff]
    %v110 = vld [vmem:[#allocation3 + $0xa8] sm:$0xff]
    %v111 = vld [vmem:[#allocation3 + $0xb0] sm:$0xff]
    %v112 = vld [vmem:[#allocation3 + $0xb8] sm:$0xff]
    %v113 = vld [vmem:[#allocation3 + $0xc0] sm:$0xff]
    %v114 = vld [vmem:[#allocation3 + $0xc8] sm:$0xff]
    %v115 = vld [vmem:[#allocation3 + $0xd0] sm:$0xff]
    %v116 = vld [vmem:[#allocation3 + $0xd8] sm:$0xff]
    %v117 = vld [vmem:[#allocation3 + $0xe0] sm:$0xff]
    %v118 = vld [vmem:[#allocation3 + $0xe8] sm:$0xff]
    %v119 = vld [vmem:[#allocation3 + $0xf0] sm:$0xff]
    %v120 = vld [vmem:[#allocation3 + $0xf8] sm:$0xff]
    %v121 = vld [vmem:[#allocation3 + $0x100] sm:$0xff]
    %v122 = vld [vmem:[#allocation3 + $0x108] sm:$0xff]
    %v123 = vld [vmem:[#allocation3 + $0x110] sm:$0xff]
    %v124 = vld [vmem:[#allocation3 + $0x118] sm:$0xff]
    %v125 = vld [vmem:[#allocation3 + $0x120] sm:$0xff]
    %v126 = vld [vmem:[#allocation3 + $0x128] sm:$0xff]
    %v127 = vld [vmem:[#allocation3 + $0x130] sm:$0xff]
    %v128 = vld [vmem:[#allocation3 + $0x138] sm:$0xff]
    %v129 = vld [vmem:[#allocation3 + $0x140] sm:$0xff]
    %v130 = vld [vmem:[#allocation3 + $0x148] sm:$0xff]
    %v131 = vld [vmem:[#allocation3 + $0x150] sm:$0xff]
    %v132 = vld [vmem:[#allocation3 + $0x158] sm:$0xff]
    %v133 = vld [vmem:[#allocation3 + $0x160] sm:$0xff]
    %v134 = vld [vmem:[#allocation3 + $0x168] sm:$0xff]
    %v135 = vld [vmem:[#allocation3 + $0x170] sm:$0xff]
    %v136 = vld [vmem:[#allocation3 + $0x178] sm:$0xff]
    %v137 = vld [vmem:[#allocation3 + $0x180] sm:$0xff]
    %v138 = vld [vmem:[#allocation3 + $0x188] sm:$0xff]
    %v139 = vld [vmem:[#allocation3 + $0x190] sm:$0xff]
    %v140 = vld [vmem:[#allocation3 + $0x198] sm:$0xff]
    %v141 = vld [vmem:[#allocation3 + $0x1a0] sm:$0xff]
    %v142 = vld [vmem:[#allocation3 + $0x1a8] sm:$0xff]
    %v143 = vld [vmem:[#allocation3 + $0x1b0] sm:$0xff]
    %v144 = vld [vmem:[#allocation3 + $0x1b8] sm:$0xff]
    %v145 = vld [vmem:[#allocation3 + $0x1c0] sm:$0xff]
    %v146 = vld [vmem:[#allocation3 + $0x1c8] sm:$0xff]
    %v147 = vld [vmem:[#allocation3 + $0x1d0] sm:$0xff]
    %v148 = vld [vmem:[#allocation3 + $0x1d8] sm:$0xff]
    %v149 = vld [vmem:[#allocation3 + $0x1e0] sm:$0xff]
    %v150 = vld [vmem:[#allocation3 + $0x1e8] sm:$0xff]
    %v151 = vld [vmem:[#allocation3 + $0x1f0] sm:$0xff]
    %v152 = vld [vmem:[#allocation3 + $0x1f8] sm:$0xff]
    %v153 = vld [vmem:[%s3] sm:$0xf]
    %v155 = vperm.slane %v153, 0
    %v156 = vperm.slane %v153, 1
    %v157 = vperm.slane %v153, 2
    %v158 = vperm.slane %v153, 3
    %163 = vmatpush.msra.mxu0 %v149
    %164 = vmatpush.msra.mxu0 %v145
    %165 = vmatpush.msra.mxu0 %v141
    %166 = vmatpush.msra.mxu0 %v137
    %167 = vmatpush.msra.mxu0 %v133
    %168 = vmatpush.msra.mxu0 %v129
    %169 = vmatpush.msra.mxu0 %v125
    %170 = vmatpush.msra.mxu0 %v121
    %171 = vmatpush.msra.mxu0 %v117
    %172 = vmatpush.msra.mxu0 %v113
    %173 = vmatpush.msra.mxu0 %v109
    %174 = vmatpush.msra.mxu0 %v105
    %175 = vmatpush.msra.mxu0 %v101
    %176 = vmatpush.msra.mxu0 %v97
    %177 = vmatpush.msra.mxu0 %v93
    %178 = vmatpush.msra.mxu0 %v89
    %179 = vmatmul.f32.gmra.mxu0 %v88
    %v180 = vpop.f32.mrf.mxu0
    %v181 = vadd.f32 %v155, %v180
    %182 = vdwg.mxu0
    %183 = vmatpush.msra.mxu0 %v150
    %184 = vmatpush.msra.mxu0 %v146
    %185 = vmatpush.msra.mxu0 %v142
    %186 = vmatpush.msra.mxu0 %v138
    %187 = vmatpush.msra.mxu0 %v134
    %188 = vmatpush.msra.mxu0 %v130
    %189 = vmatpush.msra.mxu0 %v126
    %190 = vmatpush.msra.mxu0 %v122
    %191 = vmatpush.msra.mxu0 %v118
    %192 = vmatpush.msra.mxu0 %v114
    %193 = vmatpush.msra.mxu0 %v110
    %194 = vmatpush.msra.mxu0 %v106
    %195 = vmatpush.msra.mxu0 %v102
    %196 = vmatpush.msra.mxu0 %v98
    %197 = vmatpush.msra.mxu0 %v94
    %198 = vmatpush.msra.mxu0 %v90
    %199 = vmatmul.f32.gmra.mxu0 %v88
    %v200 = vpop.f32.mrf.mxu0
    %v201 = vadd.f32 %v156, %v200
    %202 = vdwg.mxu0
    %203 = vmatpush.msra.mxu0 %v151
    %204 = vmatpush.msra.mxu0 %v147
    %205 = vmatpush.msra.mxu0 %v143
    %206 = vmatpush.msra.mxu0 %v139
    %207 = vmatpush.msra.mxu0 %v135
    %208 = vmatpush.msra.mxu0 %v131
    %209 = vmatpush.msra.mxu0 %v127
    %210 = vmatpush.msra.mxu0 %v123
    %211 = vmatpush.msra.mxu0 %v119
    %212 = vmatpush.msra.mxu0 %v115
    %213 = vmatpush.msra.mxu0 %v111
    %214 = vmatpush.msra.mxu0 %v107
    %215 = vmatpush.msra.mxu0 %v103
    %216 = vmatpush.msra.mxu0 %v99
    %217 = vmatpush.msra.mxu0 %v95
    %218 = vmatpush.msra.mxu0 %v91
    %219 = vmatmul.f32.gmra.mxu0 %v88
    %v220 = vpop.f32.mrf.mxu0
    %v221 = vadd.f32 %v157, %v220
    %222 = vdwg.mxu0
    %223 = vmatpush.msra.mxu0 %v152
    %224 = vmatpush.msra.mxu0 %v148
    %225 = vmatpush.msra.mxu0 %v144
    %226 = vmatpush.msra.mxu0 %v140
    %227 = vmatpush.msra.mxu0 %v136
    %228 = vmatpush.msra.mxu0 %v132
    %229 = vmatpush.msra.mxu0 %v128
    %230 = vmatpush.msra.mxu0 %v124
    %231 = vmatpush.msra.mxu0 %v120
    %232 = vmatpush.msra.mxu0 %v116
    %233 = vmatpush.msra.mxu0 %v112
    %234 = vmatpush.msra.mxu0 %v108
    %235 = vmatpush.msra.mxu0 %v104
    %236 = vmatpush.msra.mxu0 %v100
    %237 = vmatpush.msra.mxu0 %v96
    %238 = vmatpush.msra.mxu0 %v92
    %239 = vmatmul.f32.gmra.mxu0 %v88
    %v240 = vpop.f32.mrf.mxu0
    %v241 = vadd.f32 %v158, %v240
    %242 = vdwg.mxu0
    %v243 = vxor.u32 %v181, 2147483648
    %v244 = vmul.f32 %v243, 1.442695
    %v245 = vpow.pop %v244
    %v246 = vadd.f32 %v245, 1.0
    %v247 = vrcp.pop %v246
    %v248 = vmul.f32 %v246, %v247
    %v249 = vsub.f32 1.0, %v248
    %v250 = vmul.f32 %v247, %v249
    %v251 = vadd.f32 %v247, %v250
    %vm252 = vweird.f32 %v246
    %vm253 = vweird.f32 %v247
    %vm254 = vmor %vm252, %vm253
    %v255 = vsel %vm254, %v247, %v251
    %v256 = vand.u32 2147483647, %v246
    %vm257 = vcmp.eq.f32.partialorder %v256, 8.507059e+37
    %v258 = vand.u32 %v246, 2147483648
    %v259 = vor.u32 1.1754944e-38, %v258
    %v260 = vsel %vm257, %v259, %v255
    %v261 = vmul.f32 1.0, %v260
    %v262 = vxor.u32 %v201, 2147483648
    %v263 = vmul.f32 %v262, 1.442695
    %v264 = vpow.pop %v263
    %v265 = vadd.f32 %v264, 1.0
    %v266 = vrcp.pop %v265
    %v267 = vmul.f32 %v265, %v266
    %v268 = vsub.f32 1.0, %v267
    %v269 = vmul.f32 %v266, %v268
    %v270 = vadd.f32 %v266, %v269
    %vm271 = vweird.f32 %v265
    %vm272 = vweird.f32 %v266
    %vm273 = vmor %vm271, %vm272
    %v274 = vsel %vm273, %v266, %v270
    %v275 = vand.u32 2147483647, %v265
    %vm276 = vcmp.eq.f32.partialorder %v275, 8.507059e+37
    %v277 = vand.u32 %v265, 2147483648
    %v278 = vor.u32 1.1754944e-38, %v277
    %v279 = vsel %vm276, %v278, %v274
    %v280 = vmul.f32 1.0, %v279
    %v281 = vtanh.pop %v221
    %v282 = vxor.u32 %v241, 2147483648
    %v283 = vmul.f32 %v282, 1.442695
    %v284 = vpow.pop %v283
    %v285 = vadd.f32 %v284, 1.0
    %v286 = vrcp.pop %v285
    %v287 = vmul.f32 %v285, %v286
    %v288 = vsub.f32 1.0, %v287
    %v289 = vmul.f32 %v286, %v288
    %v290 = vadd.f32 %v286, %v289
    %vm291 = vweird.f32 %v285
    %vm292 = vweird.f32 %v286
    %vm293 = vmor %vm291, %vm292
    %v294 = vsel %vm293, %v286, %v290
    %v295 = vand.u32 2147483647, %v285
    %vm296 = vcmp.eq.f32.partialorder %v295, 8.507059e+37
    %v297 = vand.u32 %v285, 2147483648
    %v298 = vor.u32 1.1754944e-38, %v297
    %v299 = vsel %vm296, %v298, %v294
    %v300 = vmul.f32 1.0, %v299
    %v301 = vmul.f32 %v280, 0.0
    %v302 = vmul.f32 %v261, %v281
    %v303 = vadd.f32 %v301, %v302
    %v304 = vtanh.pop %v303
    %v305 = vmul.f32 %v300, %v304
    %v306 = vld [vmem:[#allocation5] sm:$0xff]
    %v307 = vld [vmem:[#allocation5 + $0x8] sm:$0xff]
    %v308 = vld [vmem:[#allocation5 + $0x10] sm:$0xff]
    %v309 = vld [vmem:[#allocation5 + $0x18] sm:$0xff]
    %v310 = vld [vmem:[#allocation5 + $0x20] sm:$0xff]
    %v311 = vld [vmem:[#allocation5 + $0x28] sm:$0xff]
    %v312 = vld [vmem:[#allocation5 + $0x30] sm:$0xff]
    %v313 = vld [vmem:[#allocation5 + $0x38] sm:$0xff]
    %v314 = vld [vmem:[#allocation5 + $0x40] sm:$0xff]
    %v315 = vld [vmem:[#allocation5 + $0x48] sm:$0xff]
    %v316 = vld [vmem:[#allocation5 + $0x50] sm:$0xff]
    %v317 = vld [vmem:[#allocation5 + $0x58] sm:$0xff]
    %v318 = vld [vmem:[#allocation5 + $0x60] sm:$0xff]
    %v319 = vld [vmem:[#allocation5 + $0x68] sm:$0xff]
    %v320 = vld [vmem:[#allocation5 + $0x70] sm:$0xff]
    %v321 = vld [vmem:[#allocation5 + $0x78] sm:$0xff]
    %v322 = vld [vmem:[%s5] sm:$0x1]
    %323 = vmatpush.msra.mxu0 %v321
    %324 = vmatpush.msra.mxu0 %v320
    %325 = vmatpush.msra.mxu0 %v319
    %326 = vmatpush.msra.mxu0 %v318
    %327 = vmatpush.msra.mxu0 %v317
    %328 = vmatpush.msra.mxu0 %v316
    %329 = vmatpush.msra.mxu0 %v315
    %330 = vmatpush.msra.mxu0 %v314
    %331 = vmatpush.msra.mxu0 %v313
    %332 = vmatpush.msra.mxu0 %v312
    %333 = vmatpush.msra.mxu0 %v311
    %334 = vmatpush.msra.mxu0 %v310
    %335 = vmatpush.msra.mxu0 %v309
    %336 = vmatpush.msra.mxu0 %v308
    %337 = vmatpush.msra.mxu0 %v307
    %338 = vmatpush.msra.mxu0 %v306
    %339 = vmatmul.f32.gmra.mxu0 %v305
    %v340 = vpop.f32.mrf.mxu0
    %v341 = vadd.f32 %v322, %v340
    %342 = vdwg.mxu0
    %v343 = vld [vmem:[%s7] sm:$0x1]
    %v344 = vadd.f32 %v341, %v343
    %v345 = vstv %s80
    %v346 = vmul.f32 %v344, %v345
    %vm347 = vcmask 1040384
    %v348 = vsel %vm347, %v346, -inf
    %349 = vmax.xlane.f32.xlu0 %v348
    %v350 = vpop.xlane.xlu0 %349
    %vm351 = vcmp.ge.f32.partialorder %v346, %v350
    %v352 = vsel %vm351, %v82, 128
    %v353 = vsel %vm347, %v352, 2147483647
    %v354 = vand.u32 %v353, 65535
    %v355 = vshra.s32 %v353, 16
    %v356 = vcvt.s32.f32 %v354
    %v357 = vcvt.s32.f32 %v355
    %358 = vmin.xlane.f32.xlu0 %v357
    %v359 = vpop.xlane.xlu0 %358
    %vm360 = vcmp.eq.f32.partialorder %v357, %v359
    %v361 = vsel %vm360, %v356, inf
    %362 = vmin.xlane.f32.xlu0 %v361
    %v363 = vpop.xlane.xlu0 %362
    %v364 = vcvt.f32.s32 %v363
    %v365 = vcvt.f32.s32 %v359
    %v366 = vshll.u32 %v365, 16
    %v367 = vadd.s32 %v366, %v364
    %vm368 = vcmp.eq.s32.totalorder %v82, %v367
    %v369 = vsel %vm368, 1, 0
    %v370 = vcvt.s32.f32 %v369
    %v371 = vperm.slane %v367, 0
    %vm372 = vcmp.eq.s32.totalorder %v84, %v371
    %v373 = vsel %vm372, 1, 0
    %v374 = vcvt.s32.f32 %v373
    %v375 = vmul.f32 %v374, %v85
    %v376 = vrot.slane %v375, 4
    %v377 = vadd.f32 %v375, %v376
    %v378 = vrot.slane %v377, 2
    %v379 = vadd.f32 %v377, %v378
    %v380 = vrot.slane %v379, 1
    %v381 = vadd.f32 %v379, %v380
    %v382 = vadd.f32 %v305, %v381
    %v383 = vsub.f32 %v346, %v350
    %v384 = vmul.f32 %v383, 1.442695
    %v385 = vpow.pop %v384
    %v386 = vsel %vm347, %v385, 0.0
    %387 = vadd.xlane.f32.xlu0 %v386
    %v388 = vpop.xlane.xlu0 %387
    %v389 = vrcp.pop %v388
    %v390 = vmul.f32 %v388, %v389
    %v391 = vsub.f32 1.0, %v390
    %v392 = vmul.f32 %v389, %v391
    %v393 = vadd.f32 %v389, %v392
    %vm394 = vweird.f32 %v388
    %vm395 = vweird.f32 %v389
    %vm396 = vmor %vm394, %vm395
    %v397 = vsel %vm396, %v389, %v393
    %v398 = vand.u32 2147483647, %v388
    %vm399 = vcmp.eq.f32.partialorder %v398, 8.507059e+37
    %v400 = vand.u32 %v388, 2147483648
    %v401 = vor.u32 1.1754944e-38, %v400
    %v402 = vsel %vm399, %v401, %v397
    %v403 = vmul.f32 %v385, %v402
    %404 = vst [vmem:[%s8] sm:$0x1] %v370
    %405 = vst [vmem:[%s9] sm:$0x1] %v403
    %v406 = vld [vmem:[#allocation3] sm:$0xff]
    %v407 = vld [vmem:[#allocation3 + $0x8] sm:$0xff]
    %v408 = vld [vmem:[#allocation3 + $0x10] sm:$0xff]
    %v409 = vld [vmem:[#allocation3 + $0x18] sm:$0xff]
    %v410 = vld [vmem:[#allocation3 + $0x20] sm:$0xff]
    %v411 = vld [vmem:[#allocation3 + $0x28] sm:$0xff]
    %v412 = vld [vmem:[#allocation3 + $0x30] sm:$0xff]
    %v413 = vld [vmem:[#allocation3 + $0x38] sm:$0xff]
    %v414 = vld [vmem:[#allocation3 + $0x40] sm:$0xff]
    %v415 = vld [vmem:[#allocation3 + $0x48] sm:$0xff]
    %v416 = vld [vmem:[#allocation3 + $0x50] sm:$0xff]
    %v417 = vld [vmem:[#allocation3 + $0x58] sm:$0xff]
    %v418 = vld [vmem:[#allocation3 + $0x60] sm:$0xff]
    %v419 = vld [vmem:[#allocation3 + $0x68] sm:$0xff]
    %v420 = vld [vmem:[#allocation3 + $0x70] sm:$0xff]
    %v421 = vld [vmem:[#allocation3 + $0x78] sm:$0xff]
    %v422 = vld [vmem:[#allocation3 + $0x80] sm:$0xff]
    %v423 = vld [vmem:[#allocation3 + $0x88] sm:$0xff]
    %v424 = vld [vmem:[#allocation3 + $0x90] sm:$0xff]
    %v425 = vld [vmem:[#allocation3 + $0x98] sm:$0xff]
    %v426 = vld [vmem:[#allocation3 + $0xa0] sm:$0xff]
    %v427 = vld [vmem:[#allocation3 + $0xa8] sm:$0xff]
    %v428 = vld [vmem:[#allocation3 + $0xb0] sm:$0xff]
    %v429 = vld [vmem:[#allocation3 + $0xb8] sm:$0xff]
    %v430 = vld [vmem:[#allocation3 + $0xc0] sm:$0xff]
    %v431 = vld [vmem:[#allocation3 + $0xc8] sm:$0xff]
    %v432 = vld [vmem:[#allocation3 + $0xd0] sm:$0xff]
    %v433 = vld [vmem:[#allocation3 + $0xd8] sm:$0xff]
    %v434 = vld [vmem:[#allocation3 + $0xe0] sm:$0xff]
    %v435 = vld [vmem:[#allocation3 + $0xe8] sm:$0xff]
    %v436 = vld [vmem:[#allocation3 + $0xf0] sm:$0xff]
    %v437 = vld [vmem:[#allocation3 + $0xf8] sm:$0xff]
    %v438 = vld [vmem:[#allocation3 + $0x100] sm:$0xff]
    %v439 = vld [vmem:[#allocation3 + $0x108] sm:$0xff]
    %v440 = vld [vmem:[#allocation3 + $0x110] sm:$0xff]
    %v441 = vld [vmem:[#allocation3 + $0x118] sm:$0xff]
    %v442 = vld [vmem:[#allocation3 + $0x120] sm:$0xff]
    %v443 = vld [vmem:[#allocation3 + $0x128] sm:$0xff]
    %v444 = vld [vmem:[#allocation3 + $0x130] sm:$0xff]
    %v445 = vld [vmem:[#allocation3 + $0x138] sm:$0xff]
    %v446 = vld [vmem:[#allocation3 + $0x140] sm:$0xff]
    %v447 = vld [vmem:[#allocation3 + $0x148] sm:$0xff]
    %v448 = vld [vmem:[#allocation3 + $0x150] sm:$0xff]
    %v449 = vld [vmem:[#allocation3 + $0x158] sm:$0xff]
    %v450 = vld [vmem:[#allocation3 + $0x160] sm:$0xff]
    %v451 = vld [vmem:[#allocation3 + $0x168] sm:$0xff]
    %v452 = vld [vmem:[#allocation3 + $0x170] sm:$0xff]
    %v453 = vld [vmem:[#allocation3 + $0x178] sm:$0xff]
    %v454 = vld [vmem:[#allocation3 + $0x180] sm:$0xff]
    %v455 = vld [vmem:[#allocation3 + $0x188] sm:$0xff]
    %v456 = vld [vmem:[#allocation3 + $0x190] sm:$0xff]
    %v457 = vld [vmem:[#allocation3 + $0x198] sm:$0xff]
    %v458 = vld [vmem:[#allocation3 + $0x1a0] sm:$0xff]
    %v459 = vld [vmem:[#allocation3 + $0x1a8] sm:$0xff]
    %v460 = vld [vmem:[#allocation3 + $0x1b0] sm:$0xff]
    %v461 = vld [vmem:[#allocation3 + $0x1b8] sm:$0xff]
    %v462 = vld [vmem:[#allocation3 + $0x1c0] sm:$0xff]
    %v463 = vld [vmem:[#allocation3 + $0x1c8] sm:$0xff]
    %v464 = vld [vmem:[#allocation3 + $0x1d0] sm:$0xff]
    %v465 = vld [vmem:[#allocation3 + $0x1d8] sm:$0xff]
    %v466 = vld [vmem:[#allocation3 + $0x1e0] sm:$0xff]
    %v467 = vld [vmem:[#allocation3 + $0x1e8] sm:$0xff]
    %v468 = vld [vmem:[#allocation3 + $0x1f0] sm:$0xff]
    %v469 = vld [vmem:[#allocation3 + $0x1f8] sm:$0xff]
    %v470 = vld [vmem:[%s3] sm:$0xf]
    %v472 = vperm.slane %v470, 0
    %v473 = vperm.slane %v470, 1
    %v474 = vperm.slane %v470, 2
    %v475 = vperm.slane %v470, 3
    %480 = vmatpush.msra.mxu0 %v466
    %481 = vmatpush.msra.mxu0 %v462
    %482 = vmatpush.msra.mxu0 %v458
    %483 = vmatpush.msra.mxu0 %v454
    %484 = vmatpush.msra.mxu0 %v450
    %485 = vmatpush.msra.mxu0 %v446
    %486 = vmatpush.msra.mxu0 %v442
    %487 = vmatpush.msra.mxu0 %v438
    %488 = vmatpush.msra.mxu0 %v434
    %489 = vmatpush.msra.mxu0 %v430
    %490 = vmatpush.msra.mxu0 %v426
    %491 = vmatpush.msra.mxu0 %v422
    %492 = vmatpush.msra.mxu0 %v418
    %493 = vmatpush.msra.mxu0 %v414
    %494 = vmatpush.msra.mxu0 %v410
    %495 = vmatpush.msra.mxu0 %v406
    %496 = vmatmul.f32.gmra.mxu0 %v382
    %v497 = vpop.f32.mrf.mxu0
    %v498 = vadd.f32 %v472, %v497
    %499 = vdwg.mxu0
    %500 = vmatpush.msra.mxu0 %v467
    %501 = vmatpush.msra.mxu0 %v463
    %502 = vmatpush.msra.mxu0 %v459
    %503 = vmatpush.msra.mxu0 %v455
    %504 = vmatpush.msra.mxu0 %v451
    %505 = vmatpush.msra.mxu0 %v447
    %506 = vmatpush.msra.mxu0 %v443
    %507 = vmatpush.msra.mxu0 %v439
    %508 = vmatpush.msra.mxu0 %v435
    %509 = vmatpush.msra.mxu0 %v431
    %510 = vmatpush.msra.mxu0 %v427
    %511 = vmatpush.msra.mxu0 %v423
    %512 = vmatpush.msra.mxu0 %v419
    %513 = vmatpush.msra.mxu0 %v415
    %514 = vmatpush.msra.mxu0 %v411
    %515 = vmatpush.msra.mxu0 %v407
    %516 = vmatmul.f32.gmra.mxu0 %v382
    %v517 = vpop.f32.mrf.mxu0
    %v518 = vadd.f32 %v473, %v517
    %519 = vdwg.mxu0
    %520 = vmatpush.msra.mxu0 %v468
    %521 = vmatpush.msra.mxu0 %v464
    %522 = vmatpush.msra.mxu0 %v460
    %523 = vmatpush.msra.mxu0 %v456
    %524 = vmatpush.msra.mxu0 %v452
    %525 = vmatpush.msra.mxu0 %v448
    %526 = vmatpush.msra.mxu0 %v444
    %527 = vmatpush.msra.mxu0 %v440
    %528 = vmatpush.msra.mxu0 %v436
    %529 = vmatpush.msra.mxu0 %v432
    %530 = vmatpush.msra.mxu0 %v428
    %531 = vmatpush.msra.mxu0 %v424
    %532 = vmatpush.msra.mxu0 %v420
    %533 = vmatpush.msra.mxu0 %v416
    %534 = vmatpush.msra.mxu0 %v412
    %535 = vmatpush.msra.mxu0 %v408
    %536 = vmatmul.f32.gmra.mxu0 %v382
    %v537 = vpop.f32.mrf.mxu0
    %v538 = vadd.f32 %v474, %v537
    %539 = vdwg.mxu0
    %540 = vmatpush.msra.mxu0 %v469
    %541 = vmatpush.msra.mxu0 %v465
    %542 = vmatpush.msra.mxu0 %v461
    %543 = vmatpush.msra.mxu0 %v457
    %544 = vmatpush.msra.mxu0 %v453
    %545 = vmatpush.msra.mxu0 %v449
    %546 = vmatpush.msra.mxu0 %v445
    %547 = vmatpush.msra.mxu0 %v441
    %548 = vmatpush.msra.mxu0 %v437
    %549 = vmatpush.msra.mxu0 %v433
    %550 = vmatpush.msra.mxu0 %v429
    %551 = vmatpush.msra.mxu0 %v425
    %552 = vmatpush.msra.mxu0 %v421
    %553 = vmatpush.msra.mxu0 %v417
    %554 = vmatpush.msra.mxu0 %v413
    %555 = vmatpush.msra.mxu0 %v409
    %556 = vmatmul.f32.gmra.mxu0 %v382
    %v557 = vpop.f32.mrf.mxu0
    %v558 = vadd.f32 %v475, %v557
    %559 = vdwg.mxu0
    %v560 = vxor.u32 %v498, 2147483648
    %v561 = vmul.f32 %v560, 1.442695
    %v562 = vpow.pop %v561
    %v563 = vadd.f32 %v562, 1.0
    %v564 = vrcp.pop %v563
    %v565 = vmul.f32 %v563, %v564
    %v566 = vsub.f32 1.0, %v565
    %v567 = vmul.f32 %v564, %v566
    %v568 = vadd.f32 %v564, %v567
    %vm569 = vweird.f32 %v563
    %vm570 = vweird.f32 %v564
    %vm571 = vmor %vm569, %vm570
    %v572 = vsel %vm571, %v564, %v568
    %v573 = vand.u32 2147483647, %v563
    %vm574 = vcmp.eq.f32.partialorder %v573, 8.507059e+37
    %v575 = vand.u32 %v563, 2147483648
    %v576 = vor.u32 1.1754944e-38, %v575
    %v577 = vsel %vm574, %v576, %v572
    %v578 = vmul.f32 1.0, %v577
    %v579 = vxor.u32 %v518, 2147483648
    %v580 = vmul.f32 %v579, 1.442695
    %v581 = vpow.pop %v580
    %v582 = vadd.f32 %v581, 1.0
    %v583 = vrcp.pop %v582
    %v584 = vmul.f32 %v582, %v583
    %v585 = vsub.f32 1.0, %v584
    %v586 = vmul.f32 %v583, %v585
    %v587 = vadd.f32 %v583, %v586
    %vm588 = vweird.f32 %v582
    %vm589 = vweird.f32 %v583
    %vm590 = vmor %vm588, %vm589
    %v591 = vsel %vm590, %v583, %v587
    %v592 = vand.u32 2147483647, %v582
    %vm593 = vcmp.eq.f32.partialorder %v592, 8.507059e+37
    %v594 = vand.u32 %v582, 2147483648
    %v595 = vor.u32 1.1754944e-38, %v594
    %v596 = vsel %vm593, %v595, %v591
    %v597 = vmul.f32 1.0, %v596
    %v598 = vtanh.pop %v538
    %v599 = vxor.u32 %v558, 2147483648
    %v600 = vmul.f32 %v599, 1.442695
    %v601 = vpow.pop %v600
    %v602 = vadd.f32 %v601, 1.0
    %v603 = vrcp.pop %v602
    %v604 = vmul.f32 %v602, %v603
    %v605 = vsub.f32 1.0, %v604
    %v606 = vmul.f32 %v603, %v605
    %v607 = vadd.f32 %v603, %v606
    %vm608 = vweird.f32 %v602
    %vm609 = vweird.f32 %v603
    %vm610 = vmor %vm608, %vm609
    %v611 = vsel %vm610, %v603, %v607
    %v612 = vand.u32 2147483647, %v602
    %vm613 = vcmp.eq.f32.partialorder %v612, 8.507059e+37
    %v614 = vand.u32 %v602, 2147483648
    %v615 = vor.u32 1.1754944e-38, %v614
    %v616 = vsel %vm613, %v615, %v611
    %v617 = vmul.f32 1.0, %v616
    %v618 = vmul.f32 %v597, %v303
    %v619 = vmul.f32 %v578, %v598
    %v620 = vadd.f32 %v618, %v619
    %v621 = vtanh.pop %v620
    %v622 = vmul.f32 %v617, %v621
    %v623 = vld [vmem:[#allocation5] sm:$0xff]
    %v624 = vld [vmem:[#allocation5 + $0x8] sm:$0xff]
    %v625 = vld [vmem:[#allocation5 + $0x10] sm:$0xff]
    %v626 = vld [vmem:[#allocation5 + $0x18] sm:$0xff]
    %v627 = vld [vmem:[#allocation5 + $0x20] sm:$0xff]
    %v628 = vld [vmem:[#allocation5 + $0x28] sm:$0xff]
    %v629 = vld [vmem:[#allocation5 + $0x30] sm:$0xff]
    %v630 = vld [vmem:[#allocation5 + $0x38] sm:$0xff]
    %v631 = vld [vmem:[#allocation5 + $0x40] sm:$0xff]
    %v632 = vld [vmem:[#allocation5 + $0x48] sm:$0xff]
    %v633 = vld [vmem:[#allocation5 + $0x50] sm:$0xff]
    %v634 = vld [vmem:[#allocation5 + $0x58] sm:$0xff]
    %v635 = vld [vmem:[#allocation5 + $0x60] sm:$0xff]
    %v636 = vld [vmem:[#allocation5 + $0x68] sm:$0xff]
    %v637 = vld [vmem:[#allocation5 + $0x70] sm:$0xff]
    %v638 = vld [vmem:[#allocation5 + $0x78] sm:$0xff]
    %v639 = vld [vmem:[%s5] sm:$0x1]
    %640 = vmatpush.msra.mxu0 %v638
    %641 = vmatpush.msra.mxu0 %v637
    %642 = vmatpush.msra.mxu0 %v636
    %643 = vmatpush.msra.mxu0 %v635
    %644 = vmatpush.msra.mxu0 %v634
    %645 = vmatpush.msra.mxu0 %v633
    %646 = vmatpush.msra.mxu0 %v632
    %647 = vmatpush.msra.mxu0 %v631
    %648 = vmatpush.msra.mxu0 %v630
    %649 = vmatpush.msra.mxu0 %v629
    %650 = vmatpush.msra.mxu0 %v628
    %651 = vmatpush.msra.mxu0 %v627
    %652 = vmatpush.msra.mxu0 %v626
    %653 = vmatpush.msra.mxu0 %v625
    %654 = vmatpush.msra.mxu0 %v624
    %655 = vmatpush.msra.mxu0 %v623
    %656 = vmatmul.f32.gmra.mxu0 %v622
    %v657 = vpop.f32.mrf.mxu0
    %v658 = vadd.f32 %v639, %v657
    %659 = vdwg.mxu0
    %v660 = vld [vmem:[%s7 + $0x1] sm:$0x1]
    %v661 = vadd.f32 %v658, %v660
    %v662 = vmul.f32 %v661, %v345
    %v663 = vsel %vm347, %v662, -inf
    %664 = vmax.xlane.f32.xlu0 %v663
    %v665 = vpop.xlane.xlu0 %664
    %vm666 = vcmp.ge.f32.partialorder %v662, %v665
    %v667 = vsel %vm666, %v82, 128
    %v668 = vsel %vm347, %v667, 2147483647
    %v669 = vand.u32 %v668, 65535
    %v670 = vshra.s32 %v668, 16
    %v671 = vcvt.s32.f32 %v669
    %v672 = vcvt.s32.f32 %v670
    %673 = vmin.xlane.f32.xlu0 %v672
    %v674 = vpop.xlane.xlu0 %673
    %vm675 = vcmp.eq.f32.partialorder %v672, %v674
    %v676 = vsel %vm675, %v671, inf
    %677 = vmin.xlane.f32.xlu0 %v676
    %v678 = vpop.xlane.xlu0 %677
    %v679 = vcvt.f32.s32 %v678
    %v680 = vcvt.f32.s32 %v674
    %v681 = vshll.u32 %v680, 16
    %v682 = vadd.s32 %v681, %v679
    %vm683 = vcmp.eq.s32.totalorder %v82, %v682
    %v684 = vsel %vm683, 1, 0
    %v685 = vcvt.s32.f32 %v684
    %v686 = vperm.slane %v682, 0
    %vm687 = vcmp.eq.s32.totalorder %v84, %v686
    %v688 = vsel %vm687, 1, 0
    %v689 = vcvt.s32.f32 %v688
    %v690 = vmul.f32 %v689, %v85
    %v691 = vrot.slane %v690, 4
    %v692 = vadd.f32 %v690, %v691
    %v693 = vrot.slane %v692, 2
    %v694 = vadd.f32 %v692, %v693
    %v695 = vrot.slane %v694, 1
    %v696 = vadd.f32 %v694, %v695
    %v697 = vadd.f32 %v622, %v696
    %v698 = vsub.f32 %v662, %v665
    %v699 = vmul.f32 %v698, 1.442695
    %v700 = vpow.pop %v699
    %v701 = vsel %vm347, %v700, 0.0
    %702 = vadd.xlane.f32.xlu0 %v701
    %v703 = vpop.xlane.xlu0 %702
    %v704 = vrcp.pop %v703
    %v705 = vmul.f32 %v703, %v704
    %v706 = vsub.f32 1.0, %v705
    %v707 = vmul.f32 %v704, %v706
    %v708 = vadd.f32 %v704, %v707
    %vm709 = vweird.f32 %v703
    %vm710 = vweird.f32 %v704
    %vm711 = vmor %vm709, %vm710
    %v712 = vsel %vm711, %v704, %v708
    %v713 = vand.u32 2147483647, %v703
    %vm714 = vcmp.eq.f32.partialorder %v713, 8.507059e+37
    %v715 = vand.u32 %v703, 2147483648
    %v716 = vor.u32 1.1754944e-38, %v715
    %v717 = vsel %vm714, %v716, %v712
    %v718 = vmul.f32 %v700, %v717
    %719 = vst [vmem:[%s8 + $0x1] sm:$0x1] %v685
    %720 = vst [vmem:[%s9 + $0x1] sm:$0x1] %v718
    %v721 = vld [vmem:[#allocation3] sm:$0xff]
    %v722 = vld [vmem:[#allocation3 + $0x8] sm:$0xff]
    %v723 = vld [vmem:[#allocation3 + $0x10] sm:$0xff]
    %v724 = vld [vmem:[#allocation3 + $0x18] sm:$0xff]
    %v725 = vld [vmem:[#allocation3 + $0x20] sm:$0xff]
    %v726 = vld [vmem:[#allocation3 + $0x28] sm:$0xff]
    %v727 = vld [vmem:[#allocation3 + $0x30] sm:$0xff]
    %v728 = vld [vmem:[#allocation3 + $0x38] sm:$0xff]
    %v729 = vld [vmem:[#allocation3 + $0x40] sm:$0xff]
    %v730 = vld [vmem:[#allocation3 + $0x48] sm:$0xff]
    %v731 = vld [vmem:[#allocation3 + $0x50] sm:$0xff]
    %v732 = vld [vmem:[#allocation3 + $0x58] sm:$0xff]
    %v733 = vld [vmem:[#allocation3 + $0x60] sm:$0xff]
    %v734 = vld [vmem:[#allocation3 + $0x68] sm:$0xff]
    %v735 = vld [vmem:[#allocation3 + $0x70] sm:$0xff]
    %v736 = vld [vmem:[#allocation3 + $0x78] sm:$0xff]
    %v737 = vld [vmem:[#allocation3 + $0x80] sm:$0xff]
    %v738 = vld [vmem:[#allocation3 + $0x88] sm:$0xff]
    %v739 = vld [vmem:[#allocation3 + $0x90] sm:$0xff]
    %v740 = vld [vmem:[#allocation3 + $0x98] sm:$0xff]
    %v741 = vld [vmem:[#allocation3 + $0xa0] sm:$0xff]
    %v742 = vld [vmem:[#allocation3 + $0xa8] sm:$0xff]
    %v743 = vld [vmem:[#allocation3 + $0xb0] sm:$0xff]
    %v744 = vld [vmem:[#allocation3 + $0xb8] sm:$0xff]
    %v745 = vld [vmem:[#allocation3 + $0xc0] sm:$0xff]
    %v746 = vld [vmem:[#allocation3 + $0xc8] sm:$0xff]
    %v747 = vld [vmem:[#allocation3 + $0xd0] sm:$0xff]
    %v748 = vld [vmem:[#allocation3 + $0xd8] sm:$0xff]
    %v749 = vld [vmem:[#allocation3 + $0xe0] sm:$0xff]
    %v750 = vld [vmem:[#allocation3 + $0xe8] sm:$0xff]
    %v751 = vld [vmem:[#allocation3 + $0xf0] sm:$0xff]
    %v752 = vld [vmem:[#allocation3 + $0xf8] sm:$0xff]
    %v753 = vld [vmem:[#allocation3 + $0x100] sm:$0xff]
    %v754 = vld [vmem:[#allocation3 + $0x108] sm:$0xff]
    %v755 = vld [vmem:[#allocation3 + $0x110] sm:$0xff]
    %v756 = vld [vmem:[#allocation3 + $0x118] sm:$0xff]
    %v757 = vld [vmem:[#allocation3 + $0x120] sm:$0xff]
    %v758 = vld [vmem:[#allocation3 + $0x128] sm:$0xff]
    %v759 = vld [vmem:[#allocation3 + $0x130] sm:$0xff]
    %v760 = vld [vmem:[#allocation3 + $0x138] sm:$0xff]
    %v761 = vld [vmem:[#allocation3 + $0x140] sm:$0xff]
    %v762 = vld [vmem:[#allocation3 + $0x148] sm:$0xff]
    %v763 = vld [vmem:[#allocation3 + $0x150] sm:$0xff]
    %v764 = vld [vmem:[#allocation3 + $0x158] sm:$0xff]
    %v765 = vld [vmem:[#allocation3 + $0x160] sm:$0xff]
    %v766 = vld [vmem:[#allocation3 + $0x168] sm:$0xff]
    %v767 = vld [vmem:[#allocation3 + $0x170] sm:$0xff]
    %v768 = vld [vmem:[#allocation3 + $0x178] sm:$0xff]
    %v769 = vld [vmem:[#allocation3 + $0x180] sm:$0xff]
    %v770 = vld [vmem:[#allocation3 + $0x188] sm:$0xff]
    %v771 = vld [vmem:[#allocation3 + $0x190] sm:$0xff]
    %v772 = vld [vmem:[#allocation3 + $0x198] sm:$0xff]
    %v773 = vld [vmem:[#allocation3 + $0x1a0] sm:$0xff]
    %v774 = vld [vmem:[#allocation3 + $0x1a8] sm:$0xff]
    %v775 = vld [vmem:[#allocation3 + $0x1b0] sm:$0xff]
    %v776 = vld [vmem:[#allocation3 + $0x1b8] sm:$0xff]
    %v777 = vld [vmem:[#allocation3 + $0x1c0] sm:$0xff]
    %v778 = vld [vmem:[#allocation3 + $0x1c8] sm:$0xff]
    %v779 = vld [vmem:[#allocation3 + $0x1d0] sm:$0xff]
    %v780 = vld [vmem:[#allocation3 + $0x1d8] sm:$0xff]
    %v781 = vld [vmem:[#allocation3 + $0x1e0] sm:$0xff]
    %v782 = vld [vmem:[#allocation3 + $0x1e8] sm:$0xff]
    %v783 = vld [vmem:[#allocation3 + $0x1f0] sm:$0xff]
    %v784 = vld [vmem:[#allocation3 + $0x1f8] sm:$0xff]
    %v785 = vld [vmem:[%s3] sm:$0xf]
    %v787 = vperm.slane %v785, 0
    %v788 = vperm.slane %v785, 1
    %v789 = vperm.slane %v785, 2
    %v790 = vperm.slane %v785, 3
    %795 = vmatpush.msra.mxu0 %v781
    %796 = vmatpush.msra.mxu0 %v777
    %797 = vmatpush.msra.mxu0 %v773
    %798 = vmatpush.msra.mxu0 %v769
    %799 = vmatpush.msra.mxu0 %v765
    %800 = vmatpush.msra.mxu0 %v761
    %801 = vmatpush.msra.mxu0 %v757
    %802 = vmatpush.msra.mxu0 %v753
    %803 = vmatpush.msra.mxu0 %v749
    %804 = vmatpush.msra.mxu0 %v745
    %805 = vmatpush.msra.mxu0 %v741
    %806 = vmatpush.msra.mxu0 %v737
    %807 = vmatpush.msra.mxu0 %v733
    %808 = vmatpush.msra.mxu0 %v729
    %809 = vmatpush.msra.mxu0 %v725
    %810 = vmatpush.msra.mxu0 %v721
    %811 = vmatmul.f32.gmra.mxu0 %v697
    %v812 = vpop.f32.mrf.mxu0
    %v813 = vadd.f32 %v787, %v812
    %814 = vdwg.mxu0
    %815 = vmatpush.msra.mxu0 %v782
    %816 = vmatpush.msra.mxu0 %v778
    %817 = vmatpush.msra.mxu0 %v774
    %818 = vmatpush.msra.mxu0 %v770
    %819 = vmatpush.msra.mxu0 %v766
    %820 = vmatpush.msra.mxu0 %v762
    %821 = vmatpush.msra.mxu0 %v758
    %822 = vmatpush.msra.mxu0 %v754
    %823 = vmatpush.msra.mxu0 %v750
    %824 = vmatpush.msra.mxu0 %v746
    %825 = vmatpush.msra.mxu0 %v742
    %826 = vmatpush.msra.mxu0 %v738
    %827 = vmatpush.msra.mxu0 %v734
    %828 = vmatpush.msra.mxu0 %v730
    %829 = vmatpush.msra.mxu0 %v726
    %830 = vmatpush.msra.mxu0 %v722
    %831 = vmatmul.f32.gmra.mxu0 %v697
    %v832 = vpop.f32.mrf.mxu0
    %v833 = vadd.f32 %v788, %v832
    %834 = vdwg.mxu0
    %835 = vmatpush.msra.mxu0 %v783
    %836 = vmatpush.msra.mxu0 %v779
    %837 = vmatpush.msra.mxu0 %v775
    %838 = vmatpush.msra.mxu0 %v771
    %839 = vmatpush.msra.mxu0 %v767
    %840 = vmatpush.msra.mxu0 %v763
    %841 = vmatpush.msra.mxu0 %v759
    %842 = vmatpush.msra.mxu0 %v755
    %843 = vmatpush.msra.mxu0 %v751
    %844 = vmatpush.msra.mxu0 %v747
    %845 = vmatpush.msra.mxu0 %v743
    %846 = vmatpush.msra.mxu0 %v739
    %847 = vmatpush.msra.mxu0 %v735
    %848 = vmatpush.msra.mxu0 %v731
    %849 = vmatpush.msra.mxu0 %v727
    %850 = vmatpush.msra.mxu0 %v723
    %851 = vmatmul.f32.gmra.mxu0 %v697
    %v852 = vpop.f32.mrf.mxu0
    %v853 = vadd.f32 %v789, %v852
    %854 = vdwg.mxu0
    %855 = vmatpush.msra.mxu0 %v784
    %856 = vmatpush.msra.mxu0 %v780
    %857 = vmatpush.msra.mxu0 %v776
    %858 = vmatpush.msra.mxu0 %v772
    %859 = vmatpush.msra.mxu0 %v768
    %860 = vmatpush.msra.mxu0 %v764
    %861 = vmatpush.msra.mxu0 %v760
    %862 = vmatpush.msra.mxu0 %v756
    %863 = vmatpush.msra.mxu0 %v752
    %864 = vmatpush.msra.mxu0 %v748
    %865 = vmatpush.msra.mxu0 %v744
    %866 = vmatpush.msra.mxu0 %v740
    %867 = vmatpush.msra.mxu0 %v736
    %868 = vmatpush.msra.mxu0 %v732
    %869 = vmatpush.msra.mxu0 %v728
    %870 = vmatpush.msra.mxu0 %v724
    %871 = vmatmul.f32.gmra.mxu0 %v697
    %v872 = vpop.f32.mrf.mxu0
    %v873 = vadd.f32 %v790, %v872
    %874 = vdwg.mxu0
    %v875 = vxor.u32 %v813, 2147483648
    %v876 = vmul.f32 %v875, 1.442695
    %v877 = vpow.pop %v876
    %v878 = vadd.f32 %v877, 1.0
    %v879 = vrcp.pop %v878
    %v880 = vmul.f32 %v878, %v879
    %v881 = vsub.f32 1.0, %v880
    %v882 = vmul.f32 %v879, %v881
    %v883 = vadd.f32 %v879, %v882
    %vm884 = vweird.f32 %v878
    %vm885 = vweird.f32 %v879
    %vm886 = vmor %vm884, %vm885
    %v887 = vsel %vm886, %v879, %v883
    %v888 = vand.u32 2147483647, %v878
    %vm889 = vcmp.eq.f32.partialorder %v888, 8.507059e+37
    %v890 = vand.u32 %v878, 2147483648
    %v891 = vor.u32 1.1754944e-38, %v890
    %v892 = vsel %vm889, %v891, %v887
    %v893 = vmul.f32 1.0, %v892
    %v894 = vxor.u32 %v833, 2147483648
    %v895 = vmul.f32 %v894, 1.442695
    %v896 = vpow.pop %v895
    %v897 = vadd.f32 %v896, 1.0
    %v898 = vrcp.pop %v897
    %v899 = vmul.f32 %v897, %v898
    %v900 = vsub.f32 1.0, %v899
    %v901 = vmul.f32 %v898, %v900
    %v902 = vadd.f32 %v898, %v901
    %vm903 = vweird.f32 %v897
    %vm904 = vweird.f32 %v898
    %vm905 = vmor %vm903, %vm904
    %v906 = vsel %vm905, %v898, %v902
    %v907 = vand.u32 2147483647, %v897
    %vm908 = vcmp.eq.f32.partialorder %v907, 8.507059e+37
    %v909 = vand.u32 %v897, 2147483648
    %v910 = vor.u32 1.1754944e-38, %v909
    %v911 = vsel %vm908, %v910, %v906
    %v912 = vmul.f32 1.0, %v911
    %v913 = vtanh.pop %v853
    %v914 = vxor.u32 %v873, 2147483648
    %v915 = vmul.f32 %v914, 1.442695
    %v916 = vpow.pop %v915
    %v917 = vadd.f32 %v916, 1.0
    %v918 = vrcp.pop %v917
    %v919 = vmul.f32 %v917, %v918
    %v920 = vsub.f32 1.0, %v919
    %v921 = vmul.f32 %v918, %v920
    %v922 = vadd.f32 %v918, %v921
    %vm923 = vweird.f32 %v917
    %vm924 = vweird.f32 %v918
    %vm925 = vmor %vm923, %vm924
    %v926 = vsel %vm925, %v918, %v922
    %v927 = vand.u32 2147483647, %v917
    %vm928 = vcmp.eq.f32.partialorder %v927, 8.507059e+37
    %v929 = vand.u32 %v917, 2147483648
    %v930 = vor.u32 1.1754944e-38, %v929
    %v931 = vsel %vm928, %v930, %v926
    %v932 = vmul.f32 1.0, %v931
    %v933 = vmul.f32 %v912, %v620
    %v934 = vmul.f32 %v893, %v913
    %v935 = vadd.f32 %v933, %v934
    %v936 = vtanh.pop %v935
    %v937 = vmul.f32 %v932, %v936
    %v938 = vld [vmem:[#allocation5] sm:$0xff]
    %v939 = vld [vmem:[#allocation5 + $0x8] sm:$0xff]
    %v940 = vld [vmem:[#allocation5 + $0x10] sm:$0xff]
    %v941 = vld [vmem:[#allocation5 + $0x18] sm:$0xff]
    %v942 = vld [vmem:[#allocation5 + $0x20] sm:$0xff]
    %v943 = vld [vmem:[#allocation5 + $0x28] sm:$0xff]
    %v944 = vld [vmem:[#allocation5 + $0x30] sm:$0xff]
    %v945 = vld [vmem:[#allocation5 + $0x38] sm:$0xff]
    %v946 = vld [vmem:[#allocation5 + $0x40] sm:$0xff]
    %v947 = vld [vmem:[#allocation5 + $0x48] sm:$0xff]
    %v948 = vld [vmem:[#allocation5 + $0x50] sm:$0xff]
    %v949 = vld [vmem:[#allocation5 + $0x58] sm:$0xff]
    %v950 = vld [vmem:[#allocation5 + $0x60] sm:$0xff]
    %v951 = vld [vmem:[#allocation5 + $0x68] sm:$0xff]
    %v952 = vld [vmem:[#allocation5 + $0x70] sm:$0xff]
    %v953 = vld [vmem:[#allocation5 + $0x78] sm:$0xff]
    %v954 = vld [vmem:[%s5] sm:$0x1]
    %955 = vmatpush.msra.mxu0 %v953
    %956 = vmatpush.msra.mxu0 %v952
    %957 = vmatpush.msra.mxu0 %v951
    %958 = vmatpush.msra.mxu0 %v950
    %959 = vmatpush.msra.mxu0 %v949
    %960 = vmatpush.msra.mxu0 %v948
    %961 = vmatpush.msra.mxu0 %v947
    %962 = vmatpush.msra.mxu0 %v946
    %963 = vmatpush.msra.mxu0 %v945
    %964 = vmatpush.msra.mxu0 %v944
    %965 = vmatpush.msra.mxu0 %v943
    %966 = vmatpush.msra.mxu0 %v942
    %967 = vmatpush.msra.mxu0 %v941
    %968 = vmatpush.msra.mxu0 %v940
    %969 = vmatpush.msra.mxu0 %v939
    %970 = vmatpush.msra.mxu0 %v938
    %971 = vmatmul.f32.gmra.mxu0 %v937
    %v972 = vpop.f32.mrf.mxu0
    %v973 = vadd.f32 %v954, %v972
    %974 = vdwg.mxu0
    %v975 = vld [vmem:[%s7 + $0x2] sm:$0x1]
    %v976 = vadd.f32 %v973, %v975
    %v977 = vmul.f32 %v976, %v345
    %v978 = vsel %vm347, %v977, -inf
    %979 = vmax.xlane.f32.xlu0 %v978
    %v980 = vpop.xlane.xlu0 %979
    %vm981 = vcmp.ge.f32.partialorder %v977, %v980
    %v982 = vsel %vm981, %v82, 128
    %v983 = vsel %vm347, %v982, 2147483647
    %v984 = vand.u32 %v983, 65535
    %v985 = vshra.s32 %v983, 16
    %v986 = vcvt.s32.f32 %v984
    %v987 = vcvt.s32.f32 %v985
    %988 = vmin.xlane.f32.xlu0 %v987
    %v989 = vpop.xlane.xlu0 %988
    %vm990 = vcmp.eq.f32.partialorder %v987, %v989
    %v991 = vsel %vm990, %v986, inf
    %992 = vmin.xlane.f32.xlu0 %v991
    %v993 = vpop.xlane.xlu0 %992
    %v994 = vcvt.f32.s32 %v993
    %v995 = vcvt.f32.s32 %v989
    %v996 = vshll.u32 %v995, 16
    %v997 = vadd.s32 %v996, %v994
    %vm998 = vcmp.eq.s32.totalorder %v82, %v997
    %v999 = vsel %vm998, 1, 0
    %v1000 = vcvt.s32.f32 %v999
    %v1001 = vsub.f32 %v977, %v980
    %v1002 = vmul.f32 %v1001, 1.442695
    %v1003 = vpow.pop %v1002
    %v1004 = vsel %vm347, %v1003, 0.0
    %1005 = vadd.xlane.f32.xlu0 %v1004
    %v1006 = vpop.xlane.xlu0 %1005
    %v1007 = vrcp.pop %v1006
    %v1008 = vmul.f32 %v1006, %v1007
    %v1009 = vsub.f32 1.0, %v1008
    %v1010 = vmul.f32 %v1007, %v1009
    %v1011 = vadd.f32 %v1007, %v1010
    %vm1012 = vweird.f32 %v1006
    %vm1013 = vweird.f32 %v1007
    %vm1014 = vmor %vm1012, %vm1013
    %v1015 = vsel %vm1014, %v1007, %v1011
    %v1016 = vand.u32 2147483647, %v1006
    %vm1017 = vcmp.eq.f32.partialorder %v1016, 8.507059e+37
    %v1018 = vand.u32 %v1006, 2147483648
    %v1019 = vor.u32 1.1754944e-38, %v1018
    %v1020 = vsel %vm1017, %v1019, %v1015
    %v1021 = vmul.f32 %v1003, %v1020
    %1022 = vst [vmem:[%s8 + $0x2] sm:$0x1] %v1000
    %1023 = vst [vmem:[%s9 + $0x2] sm:$0x1] %v1021
    // Predicated region
    $region42: #{_run.1} parent=1 // pred_check
      _
    $region43: #{_run.1} parent=1 // pred_check_branch
      %1025 = sbr.rel (0) target = $region45
    $region44: #{_run.1} parent=1 // pred_region
      _
    $region45: #{_run.1} parent=1 // pred_fallthru
      _
    // Predicated region
    $region46: #{_run.1} parent=1 // pred_check
      _
    $region47: #{_run.1} parent=1 // pred_check_branch
      %1027 = sbr.rel (0) target = $region49
    $region48: #{_run.1} parent=1 // pred_region
      _
    $region49: #{_run.1} parent=1 // pred_fallthru
      _
    // Predicated region
    $region50: #{_run.1} parent=1 // pred_check
      _
    $region51: #{_run.1} parent=1 // pred_check_branch
      %1029 = sbr.rel (0) target = $region53
    $region52: #{_run.1} parent=1 // pred_region
      _
    $region53: #{_run.1} parent=1 // pred_fallthru
      _
    // Predicated region
    $region54: #{_run.1} parent=1 // pred_check
      _
    $region55: #{_run.1} parent=1 // pred_check_branch
      %1031 = sbr.rel (0) target = $region57
    $region56: #{_run.1} parent=1 // pred_region
      _
    $region57: #{_run.1} parent=1 // pred_fallthru
      _
    %1032 = vsyncpa [#allocation4], 1
    %1033 = vsyncpa [#allocation6], 1

</llo_original>
